<compile_context>
chip_gen: v7x
topology: tpu7x:2x2x1
jax: 0.10.0
libtpu: 0.0.40
codegen_flags: <defaults>
</compile_context>

<pallas_src>
import jax
import jax.numpy as jnp
from jax.experimental import pallas as pl
from jax.experimental.pallas import tpu as pltpu

# ----------------------------- hyper-parameters ------------------------------
EMBED = 32                     # embedding_dimensions
BLOCK_SIZE = 10                # max context (mask built for actual T <= 10)
N_HEADS = 4
HEAD_SIZE = EMBED // N_HEADS   # 8
NEG_BIG = -1e30                # finite "minus infinity" for masking


# --------------------------------- kernel ------------------------------------
def mha_kernel(x_ref, wqkv_ref, wproj_ref, bproj_ref, o_ref):
    B, T, C = x_ref.shape
    D = HEAD_SIZE

    # ---- fused Q/K/V projection: one 2-D matmul over (B*T) rows -------------
    x2 = x_ref[...].reshape(B * T, C)
    qkv = jnp.dot(x2, wqkv_ref[...],
                  preferred_element_type=jnp.float32)          # (B*T, 3C)
    qkv = qkv.reshape(B, T, 3 * C)

    # causal mask (1, T, T): position t may attend to s <= t
    row = jax.lax.broadcasted_iota(jnp.int32, (T, T), 0)
    col = jax.lax.broadcasted_iota(jnp.int32, (T, T), 1)
    causal = (row >= col)[None, :, :]

    scale = jnp.float32(D ** -0.5)

    # ---- per-head causal attention (unrolled; see header note) --------------
    head_outs = []
    for h in range(N_HEADS):
        off = h * D
        qh = qkv[..., off:off + D]                              # (B, T, D)
        kh = qkv[..., C + off:C + off + D]                      # (B, T, D)
        vh = qkv[..., 2 * C + off:2 * C + off + D]              # (B, T, D)

        s = jnp.einsum('btd,bsd->bts', qh, kh,
                       preferred_element_type=jnp.float32) * scale   # (B,T,T)
        s = jnp.where(causal, s, jnp.float32(NEG_BIG))
        s = s - jnp.max(s, axis=-1, keepdims=True)
        e = jnp.exp(s)
        p = e * pl.reciprocal(jnp.sum(e, axis=-1, keepdims=True), approx=True)
        # NOTE: dropout on `p` (p=0.2 in train mode) is identity in eval mode.
        head_outs.append(jnp.einsum('bts,bsd->btd', p, vh,
                                    preferred_element_type=jnp.float32))

    # ---- concat heads (torch.cat order) + single output projection ----------
    ctx = jnp.concatenate(head_outs, axis=-1).reshape(B * T, C)       # (B*T, C)
    out = jnp.dot(ctx, wproj_ref[...],
                  preferred_element_type=jnp.float32) + bproj_ref[...]
    o_ref[...] = out.reshape(B, T, C)


# --------------------------------- wrapper ------------------------------------
@jax.jit
def multi_head_attention(x, wq, wk, wv, w_proj, b_proj):
    """x: (B, T, C) float32.
    wq/wk/wv: (N_HEADS, C, HEAD_SIZE), stored so head h computes x @ wq[h]
              (i.e. transposed vs. torch Linear.weight).
    w_proj: (C, C) in x @ W convention; b_proj: (C,)."""
    B, T, C = x.shape
    # Pack per-head Q|K|V weights into one (C, 3C) matrix, head-major columns.
    wq2 = jnp.transpose(wq, (1, 0, 2)).reshape(C, C)
    wk2 = jnp.transpose(wk, (1, 0, 2)).reshape(C, C)
    wv2 = jnp.transpose(wv, (1, 0, 2)).reshape(C, C)
    w_qkv = jnp.concatenate([wq2, wk2, wv2], axis=1)            # (C, 3C)
    b2 = b_proj.reshape(1, C)

    return pl.pallas_call(
        mha_kernel,
        out_shape=jax.ShapeDtypeStruct((B, T, C), jnp.float32),
        compiler_params=pltpu.CompilerParams(vmem_limit_bytes=8 * 1024 * 1024),
    )(x, w_qkv, w_proj, b2)


# ------------------------- pure-JAX reference (spec) --------------------------
def mha_reference(x, wq, wk, wv, w_proj, b_proj):
    B, T, C = x.shape
    mask = jnp.tril(jnp.ones((T, T), dtype=bool))[None]
    outs = []
    for h in range(N_HEADS):
        q = x @ wq[h]
        k = x @ wk[h]
        v = x @ wv[h]
        wei = jnp.einsum('btd,bsd->bts', q, k) * (HEAD_SIZE ** -0.5)
        wei = jnp.where(mask, wei, -jnp.inf)
        wei = jax.nn.softmax(wei, axis=-1)
        outs.append(jnp.einsum('bts,bsd->btd', wei, v))
    out = jnp.concatenate(outs, axis=-1)
    return out @ w_proj + b_proj[None, None, :]


if __name__ == "__main__":
    key = jax.random.PRNGKey(0)
    kx, kq, kk, kv, kp, kb = jax.random.split(key, 6)

    B, T, C = 2, 8, EMBED          # T <= block_size
    x = jax.random.normal(kx, (B, T, C), jnp.float32)
    wq = jax.random.normal(kq, (N_HEADS, C, HEAD_SIZE), jnp.float32) * 0.1
    wk = jax.random.normal(kk, (N_HEADS, C, HEAD_SIZE), jnp.float32) * 0.1
    wv = jax.random.normal(kv, (N_HEADS, C, HEAD_SIZE), jnp.float32) * 0.1
    w_proj = jax.random.normal(kp, (C, C), jnp.float32) * 0.1
    b_proj = jax.random.normal(kb, (C,), jnp.float32) * 0.1

    out = multi_head_attention(x, wq, wk, wv, w_proj, b_proj)
    out = jax.block_until_ready(out)

    with jax.default_matmul_precision("highest"):
        ref = mha_reference(x, wq, wk, wv, w_proj, b_proj)

    assert out.shape == (B, T, C), out.shape
    assert bool(jnp.all(jnp.isfinite(out))), "non-finite output"
    max_err = float(jnp.max(jnp.abs(out - ref)))
    assert max_err < 2e-2, f"mismatch vs reference: max abs err = {max_err}"
    print("KERNEL_OK")
</pallas_src>

<mosaic_0001>
module attributes {stable_mosaic.version = 11 : i64} {
  func.func @mha_kernel(%arg0: memref<2x8x32xf32, #tpu.memory_space<vmem>>, %arg1: memref<32x96xf32, #tpu.memory_space<vmem>>, %arg2: memref<32x32xf32, #tpu.memory_space<vmem>>, %arg3: memref<1x32xf32, #tpu.memory_space<vmem>>, %arg4: memref<2x8x32xf32, #tpu.memory_space<vmem>>) attributes {dimension_semantics = [], scalar_prefetch = 0 : i64, scratch_operands = 0 : i64, tpu.core_type = #tpu.core_type<tc>} {
    %c0 = arith.constant 0 : index
    %c0_0 = arith.constant 0 : index
    %c0_1 = arith.constant 0 : index
    %0 = vector.load %arg0[%c0, %c0_0, %c0_1] : memref<2x8x32xf32, #tpu.memory_space<vmem>>, vector<2x8x32xf32>
    %1 = vector.shape_cast %0 : vector<2x8x32xf32> to vector<16x32xf32>
    %c0_2 = arith.constant 0 : index
    %c0_3 = arith.constant 0 : index
    %2 = vector.load %arg1[%c0_2, %c0_3] : memref<32x96xf32, #tpu.memory_space<vmem>>, vector<32x96xf32>
    %cst = arith.constant dense<0.000000e+00> : vector<16x96xf32>
    %3 = tpu.matmul %1, %2, %cst {dimension_numbers = #tpu.dot_dimension_numbers<[1], [0], [0], [1], [0, 0, 1, 1], [], []>} : vector<16x32xf32>, vector<32x96xf32>, vector<16x96xf32> -> vector<16x96xf32>
    %4 = vector.shape_cast %3 : vector<16x96xf32> to vector<2x8x96xf32>
    %5 = tpu.iota {dimensions = array<i32: 0>} : vector<8x8xi32>
    %6 = tpu.iota {dimensions = array<i32: 1>} : vector<8x8xi32>
    %7 = arith.cmpi sge, %5, %6 : vector<8x8xi32>
    %8 = vector.shape_cast %7 : vector<8x8xi1> to vector<1x8x8xi1>
    %9 = vector.extract_strided_slice %4 {offsets = [0, 0, 0], sizes = [2, 8, 8], strides = [1, 1, 1]} : vector<2x8x96xf32> to vector<2x8x8xf32>
    %10 = vector.extract_strided_slice %4 {offsets = [0, 0, 32], sizes = [2, 8, 8], strides = [1, 1, 1]} : vector<2x8x96xf32> to vector<2x8x8xf32>
    %11 = vector.extract_strided_slice %4 {offsets = [0, 0, 64], sizes = [2, 8, 8], strides = [1, 1, 1]} : vector<2x8x96xf32> to vector<2x8x8xf32>
    "tpu.trace_start"() <{level = 10 : i32, message = "btd,bsd->bts"}> : () -> ()
    %cst_4 = arith.constant dense<0.000000e+00> : vector<2x8x8xf32>
    %12 = tpu.matmul %9, %10, %cst_4 {dimension_numbers = #tpu.dot_dimension_numbers<[2], [2], [1], [1], [0, 0, 0, 1, 1, 1], [0], [0]>} : vector<2x8x8xf32>, vector<2x8x8xf32>, vector<2x8x8xf32> -> vector<2x8x8xf32>
    "tpu.trace_stop"() : () -> ()
    %cst_5 = arith.constant 0.353553385 : f32
    %13 = vector.broadcast %cst_5 : f32 to vector<2x8x8xf32>
    %14 = arith.mulf %12, %13 : vector<2x8x8xf32>
    %cst_6 = arith.constant -1.000000e+30 : f32
    %15 = vector.shape_cast %8 : vector<1x8x8xi1> to vector<1x8x8xi1>
    %16 = vector.broadcast %15 : vector<1x8x8xi1> to vector<2x8x8xi1>
    %17 = vector.broadcast %cst_6 : f32 to vector<2x8x8xf32>
    %18 = arith.select %16, %14, %17 : vector<2x8x8xi1>, vector<2x8x8xf32>
    %cst_7 = arith.constant dense<0xFF800000> : vector<2x8xf32>
    %19 = vector.multi_reduction <maximumf>, %18, %cst_7 [2] : vector<2x8x8xf32> to vector<2x8xf32>
    %20 = vector.shape_cast %19 : vector<2x8xf32> to vector<2x8x1xf32>
    %21 = vector.broadcast %20 : vector<2x8x1xf32> to vector<2x8x8xf32>
    %22 = arith.subf %18, %21 : vector<2x8x8xf32>
    %23 = math.exp %22 : vector<2x8x8xf32>
    %cst_8 = arith.constant dense<0.000000e+00> : vector<2x8xf32>
    %24 = vector.multi_reduction <add>, %23, %cst_8 [2] : vector<2x8x8xf32> to vector<2x8xf32>
    %25 = vector.shape_cast %24 : vector<2x8xf32> to vector<2x8x1xf32>
    %26 = tpu.reciprocal %25 {approx = true} : vector<2x8x1xf32> -> vector<2x8x1xf32>
    %27 = vector.broadcast %26 : vector<2x8x1xf32> to vector<2x8x8xf32>
    %28 = arith.mulf %23, %27 : vector<2x8x8xf32>
    "tpu.trace_start"() <{level = 10 : i32, message = "bts,bsd->btd"}> : () -> ()
    %cst_9 = arith.constant dense<0.000000e+00> : vector<2x8x8xf32>
    %29 = tpu.matmul %28, %11, %cst_9 {dimension_numbers = #tpu.dot_dimension_numbers<[2], [1], [1], [2], [0, 0, 0, 1, 1, 2], [0], [0]>} : vector<2x8x8xf32>, vector<2x8x8xf32>, vector<2x8x8xf32> -> vector<2x8x8xf32>
    "tpu.trace_stop"() : () -> ()
    %30 = vector.extract_strided_slice %4 {offsets = [0, 0, 8], sizes = [2, 8, 8], strides = [1, 1, 1]} : vector<2x8x96xf32> to vector<2x8x8xf32>
    %31 = vector.extract_strided_slice %4 {offsets = [0, 0, 40], sizes = [2, 8, 8], strides = [1, 1, 1]} : vector<2x8x96xf32> to vector<2x8x8xf32>
    %32 = vector.extract_strided_slice %4 {offsets = [0, 0, 72], sizes = [2, 8, 8], strides = [1, 1, 1]} : vector<2x8x96xf32> to vector<2x8x8xf32>
    "tpu.trace_start"() <{level = 10 : i32, message = "btd,bsd->bts"}> : () -> ()
    %cst_10 = arith.constant dense<0.000000e+00> : vector<2x8x8xf32>
    %33 = tpu.matmul %30, %31, %cst_10 {dimension_numbers = #tpu.dot_dimension_numbers<[2], [2], [1], [1], [0, 0, 0, 1, 1, 1], [0], [0]>} : vector<2x8x8xf32>, vector<2x8x8xf32>, vector<2x8x8xf32> -> vector<2x8x8xf32>
    "tpu.trace_stop"() : () -> ()
    %cst_11 = arith.constant 0.353553385 : f32
    %34 = vector.broadcast %cst_11 : f32 to vector<2x8x8xf32>
    %35 = arith.mulf %33, %34 : vector<2x8x8xf32>
    %cst_12 = arith.constant -1.000000e+30 : f32
    %36 = vector.shape_cast %8 : vector<1x8x8xi1> to vector<1x8x8xi1>
    %37 = vector.broadcast %36 : vector<1x8x8xi1> to vector<2x8x8xi1>
    %38 = vector.broadcast %cst_12 : f32 to vector<2x8x8xf32>
    %39 = arith.select %37, %35, %38 : vector<2x8x8xi1>, vector<2x8x8xf32>
    %cst_13 = arith.constant dense<0xFF800000> : vector<2x8xf32>
    %40 = vector.multi_reduction <maximumf>, %39, %cst_13 [2] : vector<2x8x8xf32> to vector<2x8xf32>
    %41 = vector.shape_cast %40 : vector<2x8xf32> to vector<2x8x1xf32>
    %42 = vector.broadcast %41 : vector<2x8x1xf32> to vector<2x8x8xf32>
    %43 = arith.subf %39, %42 : vector<2x8x8xf32>
    %44 = math.exp %43 : vector<2x8x8xf32>
    %cst_14 = arith.constant dense<0.000000e+00> : vector<2x8xf32>
    %45 = vector.multi_reduction <add>, %44, %cst_14 [2] : vector<2x8x8xf32> to vector<2x8xf32>
    %46 = vector.shape_cast %45 : vector<2x8xf32> to vector<2x8x1xf32>
    %47 = tpu.reciprocal %46 {approx = true} : vector<2x8x1xf32> -> vector<2x8x1xf32>
    %48 = vector.broadcast %47 : vector<2x8x1xf32> to vector<2x8x8xf32>
    %49 = arith.mulf %44, %48 : vector<2x8x8xf32>
    "tpu.trace_start"() <{level = 10 : i32, message = "bts,bsd->btd"}> : () -> ()
    %cst_15 = arith.constant dense<0.000000e+00> : vector<2x8x8xf32>
    %50 = tpu.matmul %49, %32, %cst_15 {dimension_numbers = #tpu.dot_dimension_numbers<[2], [1], [1], [2], [0, 0, 0, 1, 1, 2], [0], [0]>} : vector<2x8x8xf32>, vector<2x8x8xf32>, vector<2x8x8xf32> -> vector<2x8x8xf32>
    "tpu.trace_stop"() : () -> ()
    %51 = vector.extract_strided_slice %4 {offsets = [0, 0, 16], sizes = [2, 8, 8], strides = [1, 1, 1]} : vector<2x8x96xf32> to vector<2x8x8xf32>
    %52 = vector.extract_strided_slice %4 {offsets = [0, 0, 48], sizes = [2, 8, 8], strides = [1, 1, 1]} : vector<2x8x96xf32> to vector<2x8x8xf32>
    %53 = vector.extract_strided_slice %4 {offsets = [0, 0, 80], sizes = [2, 8, 8], strides = [1, 1, 1]} : vector<2x8x96xf32> to vector<2x8x8xf32>
    "tpu.trace_start"() <{level = 10 : i32, message = "btd,bsd->bts"}> : () -> ()
    %cst_16 = arith.constant dense<0.000000e+00> : vector<2x8x8xf32>
    %54 = tpu.matmul %51, %52, %cst_16 {dimension_numbers = #tpu.dot_dimension_numbers<[2], [2], [1], [1], [0, 0, 0, 1, 1, 1], [0], [0]>} : vector<2x8x8xf32>, vector<2x8x8xf32>, vector<2x8x8xf32> -> vector<2x8x8xf32>
    "tpu.trace_stop"() : () -> ()
    %cst_17 = arith.constant 0.353553385 : f32
    %55 = vector.broadcast %cst_17 : f32 to vector<2x8x8xf32>
    %56 = arith.mulf %54, %55 : vector<2x8x8xf32>
    %cst_18 = arith.constant -1.000000e+30 : f32
    %57 = vector.shape_cast %8 : vector<1x8x8xi1> to vector<1x8x8xi1>
    %58 = vector.broadcast %57 : vector<1x8x8xi1> to vector<2x8x8xi1>
    %59 = vector.broadcast %cst_18 : f32 to vector<2x8x8xf32>
    %60 = arith.select %58, %56, %59 : vector<2x8x8xi1>, vector<2x8x8xf32>
    %cst_19 = arith.constant dense<0xFF800000> : vector<2x8xf32>
    %61 = vector.multi_reduction <maximumf>, %60, %cst_19 [2] : vector<2x8x8xf32> to vector<2x8xf32>
    %62 = vector.shape_cast %61 : vector<2x8xf32> to vector<2x8x1xf32>
    %63 = vector.broadcast %62 : vector<2x8x1xf32> to vector<2x8x8xf32>
    %64 = arith.subf %60, %63 : vector<2x8x8xf32>
    %65 = math.exp %64 : vector<2x8x8xf32>
    %cst_20 = arith.constant dense<0.000000e+00> : vector<2x8xf32>
    %66 = vector.multi_reduction <add>, %65, %cst_20 [2] : vector<2x8x8xf32> to vector<2x8xf32>
    %67 = vector.shape_cast %66 : vector<2x8xf32> to vector<2x8x1xf32>
    %68 = tpu.reciprocal %67 {approx = true} : vector<2x8x1xf32> -> vector<2x8x1xf32>
    %69 = vector.broadcast %68 : vector<2x8x1xf32> to vector<2x8x8xf32>
    %70 = arith.mulf %65, %69 : vector<2x8x8xf32>
    "tpu.trace_start"() <{level = 10 : i32, message = "bts,bsd->btd"}> : () -> ()
    %cst_21 = arith.constant dense<0.000000e+00> : vector<2x8x8xf32>
    %71 = tpu.matmul %70, %53, %cst_21 {dimension_numbers = #tpu.dot_dimension_numbers<[2], [1], [1], [2], [0, 0, 0, 1, 1, 2], [0], [0]>} : vector<2x8x8xf32>, vector<2x8x8xf32>, vector<2x8x8xf32> -> vector<2x8x8xf32>
    "tpu.trace_stop"() : () -> ()
    %72 = vector.extract_strided_slice %4 {offsets = [0, 0, 24], sizes = [2, 8, 8], strides = [1, 1, 1]} : vector<2x8x96xf32> to vector<2x8x8xf32>
    %73 = vector.extract_strided_slice %4 {offsets = [0, 0, 56], sizes = [2, 8, 8], strides = [1, 1, 1]} : vector<2x8x96xf32> to vector<2x8x8xf32>
    %74 = vector.extract_strided_slice %4 {offsets = [0, 0, 88], sizes = [2, 8, 8], strides = [1, 1, 1]} : vector<2x8x96xf32> to vector<2x8x8xf32>
    "tpu.trace_start"() <{level = 10 : i32, message = "btd,bsd->bts"}> : () -> ()
    %cst_22 = arith.constant dense<0.000000e+00> : vector<2x8x8xf32>
    %75 = tpu.matmul %72, %73, %cst_22 {dimension_numbers = #tpu.dot_dimension_numbers<[2], [2], [1], [1], [0, 0, 0, 1, 1, 1], [0], [0]>} : vector<2x8x8xf32>, vector<2x8x8xf32>, vector<2x8x8xf32> -> vector<2x8x8xf32>
    "tpu.trace_stop"() : () -> ()
    %cst_23 = arith.constant 0.353553385 : f32
    %76 = vector.broadcast %cst_23 : f32 to vector<2x8x8xf32>
    %77 = arith.mulf %75, %76 : vector<2x8x8xf32>
    %cst_24 = arith.constant -1.000000e+30 : f32
    %78 = vector.shape_cast %8 : vector<1x8x8xi1> to vector<1x8x8xi1>
    %79 = vector.broadcast %78 : vector<1x8x8xi1> to vector<2x8x8xi1>
    %80 = vector.broadcast %cst_24 : f32 to vector<2x8x8xf32>
    %81 = arith.select %79, %77, %80 : vector<2x8x8xi1>, vector<2x8x8xf32>
    %cst_25 = arith.constant dense<0xFF800000> : vector<2x8xf32>
    %82 = vector.multi_reduction <maximumf>, %81, %cst_25 [2] : vector<2x8x8xf32> to vector<2x8xf32>
    %83 = vector.shape_cast %82 : vector<2x8xf32> to vector<2x8x1xf32>
    %84 = vector.broadcast %83 : vector<2x8x1xf32> to vector<2x8x8xf32>
    %85 = arith.subf %81, %84 : vector<2x8x8xf32>
    %86 = math.exp %85 : vector<2x8x8xf32>
    %cst_26 = arith.constant dense<0.000000e+00> : vector<2x8xf32>
    %87 = vector.multi_reduction <add>, %86, %cst_26 [2] : vector<2x8x8xf32> to vector<2x8xf32>
    %88 = vector.shape_cast %87 : vector<2x8xf32> to vector<2x8x1xf32>
    %89 = tpu.reciprocal %88 {approx = true} : vector<2x8x1xf32> -> vector<2x8x1xf32>
    %90 = vector.broadcast %89 : vector<2x8x1xf32> to vector<2x8x8xf32>
    %91 = arith.mulf %86, %90 : vector<2x8x8xf32>
    "tpu.trace_start"() <{level = 10 : i32, message = "bts,bsd->btd"}> : () -> ()
    %cst_27 = arith.constant dense<0.000000e+00> : vector<2x8x8xf32>
    %92 = tpu.matmul %91, %74, %cst_27 {dimension_numbers = #tpu.dot_dimension_numbers<[2], [1], [1], [2], [0, 0, 0, 1, 1, 2], [0], [0]>} : vector<2x8x8xf32>, vector<2x8x8xf32>, vector<2x8x8xf32> -> vector<2x8x8xf32>
    "tpu.trace_stop"() : () -> ()
    %93 = tpu.concatenate %29, %50, %71, %92 in 2 : vector<2x8x8xf32>, vector<2x8x8xf32>, vector<2x8x8xf32>, vector<2x8x8xf32> -> vector<2x8x32xf32>
    %94 = vector.shape_cast %93 : vector<2x8x32xf32> to vector<16x32xf32>
    %c0_28 = arith.constant 0 : index
    %c0_29 = arith.constant 0 : index
    %95 = vector.load %arg2[%c0_28, %c0_29] : memref<32x32xf32, #tpu.memory_space<vmem>>, vector<32x32xf32>
    %cst_30 = arith.constant dense<0.000000e+00> : vector<16x32xf32>
    %96 = tpu.matmul %94, %95, %cst_30 {dimension_numbers = #tpu.dot_dimension_numbers<[1], [0], [0], [1], [0, 0, 1, 1], [], []>} : vector<16x32xf32>, vector<32x32xf32>, vector<16x32xf32> -> vector<16x32xf32>
    %c0_31 = arith.constant 0 : index
    %c0_32 = arith.constant 0 : index
    %97 = vector.load %arg3[%c0_31, %c0_32] : memref<1x32xf32, #tpu.memory_space<vmem>>, vector<1x32xf32>
    %98 = vector.broadcast %97 : vector<1x32xf32> to vector<16x32xf32>
    %99 = arith.addf %96, %98 : vector<16x32xf32>
    %100 = vector.shape_cast %99 : vector<16x32xf32> to vector<2x8x32xf32>
    %c0_33 = arith.constant 0 : index
    %c0_34 = arith.constant 0 : index
    %c0_35 = arith.constant 0 : index
    %101 = vector.load %arg4[%c0_33, %c0_34, %c0_35] : memref<2x8x32xf32, #tpu.memory_space<vmem>>, vector<2x8x32xf32>
    tpu.vector_store %arg4[%c0_33, %c0_34, %c0_35], %100 {strides = array<i32>} : memref<2x8x32xf32, #tpu.memory_space<vmem>>, vector<2x8x32xf32>,
    return
  }
}

</mosaic_0001>

<llo_original>
// kernel: multi_head_attention.1
$region0: #{multi_head_attention.1}
  #allocation0 [shape = 'u32[]', space=smem, size = 0x4, offset = 0x4, fixed_abs, tag = 'smem constant byte address 0x4 - core index']
  #allocation1 [shape = 'u32[144,128]{1,0:T(1,128)}', space=vmem, size = 0x12000, scoped, tag = 'internal scratch']
  %s0 = inlined_call_operand.vmem [shape: f32[2,8,32], index: 0, kind: input, shape index: {}]
  %s1 = inlined_call_operand.vmem [shape: f32[32,96], index: 1, kind: input, shape index: {}]
  %s2 = inlined_call_operand.vmem [shape: f32[32,32], index: 2, kind: input, shape index: {}]
  %s3 = inlined_call_operand.vmem [shape: f32[1,32], index: 3, kind: input, shape index: {}]
  %s4 = inlined_call_operand.hbm [shape: f32[2,8,32], index: 4, kind: output, shape index: {}]
  %s5 = sld [smem:[#allocation0]]
  $region26: #{multi_head_attention.1} parent=0
    _
  %s7 = ssub.s32 1, %s5
  %s8 = scalar_select 0, %s7, %s5
  $region1: #{multi_head_attention.1} parent=0
    #allocation2 [shape = 'u8[8192]{0}', space=vmem, size = 0x2000, scoped, tag = 'output window, operand 0, single buffered']
    #allocation3 [shape = 's32[1]{0}', space=sflag, size = 0x4, scoped, tag = 'scoped memory for multi_head_attention.1']
    %9 = vsyncpa [#allocation3], 0
    // Predicated region
    $region2: #{multi_head_attention.1} parent=1 // pred_check
      _
    $region3: #{multi_head_attention.1} parent=1 // pred_check_branch
      %11 = sbr.rel (0) target = $region5
    $region4: #{multi_head_attention.1} parent=1 // pred_region
      _
    $region5: #{multi_head_attention.1} parent=1 // pred_fallthru
      _
    // Predicated region
    $region6: #{multi_head_attention.1} parent=1 // pred_check
      _
    $region7: #{multi_head_attention.1} parent=1 // pred_check_branch
      %13 = sbr.rel (0) target = $region9
    $region8: #{multi_head_attention.1} parent=1 // pred_region
      _
    $region9: #{multi_head_attention.1} parent=1 // pred_fallthru
      _
    // Predicated region
    $region10: #{multi_head_attention.1} parent=1 // pred_check
      _
    $region11: #{multi_head_attention.1} parent=1 // pred_check_branch
      %15 = sbr.rel (0) target = $region13
    $region12: #{multi_head_attention.1} parent=1 // pred_region
      _
    $region13: #{multi_head_attention.1} parent=1 // pred_fallthru
      _
    // Predicated region
    $region14: #{multi_head_attention.1} parent=1 // pred_check
      _
    $region15: #{multi_head_attention.1} parent=1 // pred_check_branch
      %17 = sbr.rel (0) target = $region17
    $region16: #{multi_head_attention.1} parent=1 // pred_region
      _
    $region17: #{multi_head_attention.1} parent=1 // pred_fallthru
      _
    %v18 = vld [vmem:[%s0] sm:$0xff]
    %v19 = vld [vmem:[%s0 + $0x8] sm:$0xff]
    %v20 = vld [vmem:[%s1] sm:$0xff]
    %v21 = vld [vmem:[%s1 + $0x8] sm:$0xff]
    %v22 = vld [vmem:[%s1 + $0x10] sm:$0xff]
    %v23 = vld [vmem:[%s1 + $0x18] sm:$0xff]
    %vm24 = vcmask 261120
    %v26 = vsel %vm24, %v18, 0
    %v29 = vsel %vm24, %v19, 0
    %31 = vmatprep.subr.mxu0 0.0
    %32 = vmatpush1.msra.mxu0 %v20
    %33 = vmatprep.subr.mxu0 0.0
    %34 = vmatpush1.msra.mxu0 %v21
    %35 = vmatprep.subr.mxu0 0.0
    %36 = vmatpush1.msra.mxu0 %v22
    %37 = vmatprep.subr.mxu0 0.0
    %38 = vmatpush1.msra.mxu0 %v23
    %39 = vmatprep.subr.mxu0 0.0
    %40 = vmatpush1.msra.mxu0 0.0
    %41 = vmatprep.subr.mxu0 0.0
    %42 = vmatpush1.msra.mxu0 0.0
    %43 = vmatprep.subr.mxu0 0.0
    %44 = vmatpush1.msra.mxu0 0.0
    %45 = vmatprep.subr.mxu0 0.0
    %46 = vmatpush1.msra.mxu0 0.0
    %47 = vmatprep.subr.mxu0 0.0
    %48 = vmatpush1.msra.mxu0 0.0
    %49 = vmatprep.subr.mxu0 0.0
    %50 = vmatpush1.msra.mxu0 0.0
    %51 = vmatprep.subr.mxu0 0.0
    %52 = vmatpush1.msra.mxu0 0.0
    %53 = vmatprep.subr.mxu0 0.0
    %54 = vmatpush1.msra.mxu0 0.0
    %55 = vmatprep.subr.mxu0 0.0
    %56 = vmatpush1.msra.mxu0 0.0
    %57 = vmatprep.subr.mxu0 0.0
    %58 = vmatpush1.msra.mxu0 0.0
    %59 = vmatprep.subr.mxu0 0.0
    %60 = vmatpush1.msra.mxu0 0.0
    %61 = vmatprep.subr.mxu0 0.0
    %62 = vmatpush1.msra.mxu0 0.0
    %63 = vmatprep.subr.mxu0 0.0
    %64 = vmatpush1.msra.mxu0 0.0
    %65 = vmatprep.subr.mxu0 0.0
    %66 = vmatpush1.msra.mxu0 0.0
    %67 = vmatprep.subr.mxu0 0.0
    %68 = vmatpush1.msra.mxu0 0.0
    %69 = vmatprep.subr.mxu0 0.0
    %70 = vmatpush1.msra.mxu0 0.0
    %71 = vmatprep.subr.mxu0 0.0
    %72 = vmatpush1.msra.mxu0 0.0
    %73 = vmatprep.subr.mxu0 0.0
    %74 = vmatpush1.msra.mxu0 0.0
    %75 = vmatprep.subr.mxu0 0.0
    %76 = vmatpush1.msra.mxu0 0.0
    %77 = vmatprep.subr.mxu0 0.0
    %78 = vmatpush1.msra.mxu0 0.0
    %79 = vmatprep.subr.mxu0 0.0
    %80 = vmatpush1.msra.mxu0 0.0
    %81 = vmatprep.subr.mxu0 0.0
    %82 = vmatpush1.msra.mxu0 0.0
    %83 = vmatprep.subr.mxu0 0.0
    %84 = vmatpush1.msra.mxu0 0.0
    %85 = vmatprep.subr.mxu0 0.0
    %86 = vmatpush1.msra.mxu0 0.0
    %87 = vmatprep.subr.mxu0 0.0
    %88 = vmatpush1.msra.mxu0 0.0
    %89 = vmatprep.subr.mxu0 0.0
    %90 = vmatpush1.msra.mxu0 0.0
    %91 = vmatprep.subr.mxu0 0.0
    %92 = vmatpush1.msra.mxu0 0.0
    %93 = vmatprep.subr.mxu0 0.0
    %94 = vmatpush1.msra.mxu0 0.0
    %95 = vmatprep.mubr.f32.mxu0 0.0
    %96 = vmatmul.mubr.f32.gmra.mrb[0].mxu0 %v26
    %v97 = vpop.f32.mrb[0].mxu0
    %v98 = vadd.f32 0.0, %v97
    %v99 = vpop.f32.mrb[0].mxu0
    %100 = vmatprep.mubr.f32.mxu0 0.0
    %101 = vmatmul.mubr.f32.gmra.mrb[0].mxu0 %v29
    %v102 = vpop.f32.mrb[0].mxu0
    %v103 = vadd.f32 0.0, %v102
    %v104 = vpop.f32.mrb[0].mxu0
    %105 = vdwg.mxu0
    %v106 = vlaneseq
    %v107 = vshrl.u32 %v106, 7
    %v108 = vlaneseq
    %v109 = vand.u32 %v108, 127
    %vm110 = vcmp.ge.s32.totalorder %v107, %v109
    %112 = vrot.lane.b32.xlu0 %v98, 96
    %v113 = vpop.permute.xlu0 %112
    %vm114 = vcmask 64512
    %v115 = vsel %vm114, %v98, 0
    %v117 = vsel %vm114, %v113, 0
    %119 = vmatprep.subr.mxu0 0.0
    %120 = vmatpush1.xpose.msra.mxu0 %v117
    %121 = vmatprep.subr.mxu0 0.0
    %122 = vmatpush1.xpose.msra.mxu0 0.0
    %123 = vmatprep.subr.mxu0 0.0
    %124 = vmatpush1.xpose.msra.mxu0 0.0
    %125 = vmatprep.subr.mxu0 0.0
    %126 = vmatpush1.xpose.msra.mxu0 0.0
    %127 = vmatprep.subr.mxu0 0.0
    %128 = vmatpush1.xpose.msra.mxu0 0.0
    %129 = vmatprep.subr.mxu0 0.0
    %130 = vmatpush1.xpose.msra.mxu0 0.0
    %131 = vmatprep.subr.mxu0 0.0
    %132 = vmatpush1.xpose.msra.mxu0 0.0
    %133 = vmatprep.subr.mxu0 0.0
    %134 = vmatpush1.xpose.msra.mxu0 0.0
    %135 = vmatprep.subr.mxu0 0.0
    %136 = vmatpush1.xpose.msra.mxu0 0.0
    %137 = vmatprep.subr.mxu0 0.0
    %138 = vmatpush1.xpose.msra.mxu0 0.0
    %139 = vmatprep.subr.mxu0 0.0
    %140 = vmatpush1.xpose.msra.mxu0 0.0
    %141 = vmatprep.subr.mxu0 0.0
    %142 = vmatpush1.xpose.msra.mxu0 0.0
    %143 = vmatprep.subr.mxu0 0.0
    %144 = vmatpush1.xpose.msra.mxu0 0.0
    %145 = vmatprep.subr.mxu0 0.0
    %146 = vmatpush1.xpose.msra.mxu0 0.0
    %147 = vmatprep.subr.mxu0 0.0
    %148 = vmatpush1.xpose.msra.mxu0 0.0
    %149 = vmatprep.subr.mxu0 0.0
    %150 = vmatpush1.xpose.msra.mxu0 0.0
    %151 = vmatprep.subr.mxu0 0.0
    %152 = vmatpush1.xpose.msra.mxu0 0.0
    %153 = vmatprep.subr.mxu0 0.0
    %154 = vmatpush1.xpose.msra.mxu0 0.0
    %155 = vmatprep.subr.mxu0 0.0
    %156 = vmatpush1.xpose.msra.mxu0 0.0
    %157 = vmatprep.subr.mxu0 0.0
    %158 = vmatpush1.xpose.msra.mxu0 0.0
    %159 = vmatprep.subr.mxu0 0.0
    %160 = vmatpush1.xpose.msra.mxu0 0.0
    %161 = vmatprep.subr.mxu0 0.0
    %162 = vmatpush1.xpose.msra.mxu0 0.0
    %163 = vmatprep.subr.mxu0 0.0
    %164 = vmatpush1.xpose.msra.mxu0 0.0
    %165 = vmatprep.subr.mxu0 0.0
    %166 = vmatpush1.xpose.msra.mxu0 0.0
    %167 = vmatprep.subr.mxu0 0.0
    %168 = vmatpush1.xpose.msra.mxu0 0.0
    %169 = vmatprep.subr.mxu0 0.0
    %170 = vmatpush1.xpose.msra.mxu0 0.0
    %171 = vmatprep.subr.mxu0 0.0
    %172 = vmatpush1.xpose.msra.mxu0 0.0
    %173 = vmatprep.subr.mxu0 0.0
    %174 = vmatpush1.xpose.msra.mxu0 0.0
    %175 = vmatprep.subr.mxu0 0.0
    %176 = vmatpush1.xpose.msra.mxu0 0.0
    %177 = vmatprep.subr.mxu0 0.0
    %178 = vmatpush1.xpose.msra.mxu0 0.0
    %179 = vmatprep.subr.mxu0 0.0
    %180 = vmatpush1.xpose.msra.mxu0 0.0
    %181 = vmatprep.subr.mxu0 0.0
    %182 = vmatpush1.xpose.msra.mxu0 0.0
    %183 = vmatprep.mubr.f32.mxu0 0.0
    %184 = vmatmul.mubr.f32.gmra.mrb[0].mxu0 %v115
    %v185 = vpop.f32.mrb[0].mxu0
    %v186 = vadd.f32 0.0, %v185
    %v187 = vpop.f32.mrb[0].mxu0
    %188 = vdwg.mxu0
    %190 = vrot.lane.b32.xlu0 %v103, 96
    %v191 = vpop.permute.xlu0 %190
    %v192 = vsel %vm114, %v103, 0
    %v194 = vsel %vm114, %v191, 0
    %196 = vmatprep.subr.mxu0 0.0
    %197 = vmatpush1.xpose.msra.mxu0 %v194
    %198 = vmatprep.subr.mxu0 0.0
    %199 = vmatpush1.xpose.msra.mxu0 0.0
    %200 = vmatprep.subr.mxu0 0.0
    %201 = vmatpush1.xpose.msra.mxu0 0.0
    %202 = vmatprep.subr.mxu0 0.0
    %203 = vmatpush1.xpose.msra.mxu0 0.0
    %204 = vmatprep.subr.mxu0 0.0
    %205 = vmatpush1.xpose.msra.mxu0 0.0
    %206 = vmatprep.subr.mxu0 0.0
    %207 = vmatpush1.xpose.msra.mxu0 0.0
    %208 = vmatprep.subr.mxu0 0.0
    %209 = vmatpush1.xpose.msra.mxu0 0.0
    %210 = vmatprep.subr.mxu0 0.0
    %211 = vmatpush1.xpose.msra.mxu0 0.0
    %212 = vmatprep.subr.mxu0 0.0
    %213 = vmatpush1.xpose.msra.mxu0 0.0
    %214 = vmatprep.subr.mxu0 0.0
    %215 = vmatpush1.xpose.msra.mxu0 0.0
    %216 = vmatprep.subr.mxu0 0.0
    %217 = vmatpush1.xpose.msra.mxu0 0.0
    %218 = vmatprep.subr.mxu0 0.0
    %219 = vmatpush1.xpose.msra.mxu0 0.0
    %220 = vmatprep.subr.mxu0 0.0
    %221 = vmatpush1.xpose.msra.mxu0 0.0
    %222 = vmatprep.subr.mxu0 0.0
    %223 = vmatpush1.xpose.msra.mxu0 0.0
    %224 = vmatprep.subr.mxu0 0.0
    %225 = vmatpush1.xpose.msra.mxu0 0.0
    %226 = vmatprep.subr.mxu0 0.0
    %227 = vmatpush1.xpose.msra.mxu0 0.0
    %228 = vmatprep.subr.mxu0 0.0
    %229 = vmatpush1.xpose.msra.mxu0 0.0
    %230 = vmatprep.subr.mxu0 0.0
    %231 = vmatpush1.xpose.msra.mxu0 0.0
    %232 = vmatprep.subr.mxu0 0.0
    %233 = vmatpush1.xpose.msra.mxu0 0.0
    %234 = vmatprep.subr.mxu0 0.0
    %235 = vmatpush1.xpose.msra.mxu0 0.0
    %236 = vmatprep.subr.mxu0 0.0
    %237 = vmatpush1.xpose.msra.mxu0 0.0
    %238 = vmatprep.subr.mxu0 0.0
    %239 = vmatpush1.xpose.msra.mxu0 0.0
    %240 = vmatprep.subr.mxu0 0.0
    %241 = vmatpush1.xpose.msra.mxu0 0.0
    %242 = vmatprep.subr.mxu0 0.0
    %243 = vmatpush1.xpose.msra.mxu0 0.0
    %244 = vmatprep.subr.mxu0 0.0
    %245 = vmatpush1.xpose.msra.mxu0 0.0
    %246 = vmatprep.subr.mxu0 0.0
    %247 = vmatpush1.xpose.msra.mxu0 0.0
    %248 = vmatprep.subr.mxu0 0.0
    %249 = vmatpush1.xpose.msra.mxu0 0.0
    %250 = vmatprep.subr.mxu0 0.0
    %251 = vmatpush1.xpose.msra.mxu0 0.0
    %252 = vmatprep.subr.mxu0 0.0
    %253 = vmatpush1.xpose.msra.mxu0 0.0
    %254 = vmatprep.subr.mxu0 0.0
    %255 = vmatpush1.xpose.msra.mxu0 0.0
    %256 = vmatprep.subr.mxu0 0.0
    %257 = vmatpush1.xpose.msra.mxu0 0.0
    %258 = vmatprep.subr.mxu0 0.0
    %259 = vmatpush1.xpose.msra.mxu0 0.0
    %260 = vmatprep.mubr.f32.mxu0 0.0
    %261 = vmatmul.mubr.f32.gmra.mrb[0].mxu0 %v192
    %v262 = vpop.f32.mrb[0].mxu0
    %v263 = vadd.f32 0.0, %v262
    %v264 = vpop.f32.mrb[0].mxu0
    %265 = vdwg.mxu0
    %v266 = vmul.f32 %v186, 0.35355338
    %v267 = vmul.f32 %v263, 0.35355338
    %v268 = vsel %vm110, 1, 0
    %vm269 = vcmp.eq.s32.totalorder %v268, 1
    %v270 = vsel %vm269, %v266, -1e+30
    %v271 = vsel %vm269, %v267, -1e+30
    %v272 = vsel %vm114, %v270, -inf
    %273 = vmax.xlane.f32.xlu0 %v272
    %v274 = vpop.xlane.xlu0 %273
    %v275 = vsel %vm114, %v271, -inf
    %276 = vmax.xlane.f32.xlu0 %v275
    %v277 = vpop.xlane.xlu0 %276
    %v278 = vsub.f32 %v270, %v274
    %v279 = vsub.f32 %v271, %v277
    %v280 = vmul.f32 %v278, 1.442695
    %v281 = vpow.pop %v280
    %v282 = vmul.f32 %v279, 1.442695
    %v283 = vpow.pop %v282
    %v284 = vsel %vm114, %v281, 0.0
    %285 = vadd.xlane.f32.xlu0 %v284
    %v286 = vpop.xlane.xlu0 %285
    %v287 = vsel %vm114, %v283, 0.0
    %288 = vadd.xlane.f32.xlu0 %v287
    %v289 = vpop.xlane.xlu0 %288
    %v290 = vrcp.pop %v286
    %v291 = vrcp.pop %v289
    %v292 = vmul.f32 %v281, %v290
    %v293 = vmul.f32 %v283, %v291
    %294 = vrot.lane.b32.xlu0 %v98, 64
    %v295 = vpop.permute.xlu0 %294
    %v298 = vsel %vm114, %v292, 0
    %300 = vmatprep.subr.mxu0 0.0
    %301 = vmatpush1.msra.mxu0 %v295
    %302 = vmatprep.subr.mxu0 0.0
    %303 = vmatpush1.msra.mxu0 0.0
    %304 = vmatprep.subr.mxu0 0.0
    %305 = vmatpush1.msra.mxu0 0.0
    %306 = vmatprep.subr.mxu0 0.0
    %307 = vmatpush1.msra.mxu0 0.0
    %308 = vmatprep.subr.mxu0 0.0
    %309 = vmatpush1.msra.mxu0 0.0
    %310 = vmatprep.subr.mxu0 0.0
    %311 = vmatpush1.msra.mxu0 0.0
    %312 = vmatprep.subr.mxu0 0.0
    %313 = vmatpush1.msra.mxu0 0.0
    %314 = vmatprep.subr.mxu0 0.0
    %315 = vmatpush1.msra.mxu0 0.0
    %316 = vmatprep.subr.mxu0 0.0
    %317 = vmatpush1.msra.mxu0 0.0
    %318 = vmatprep.subr.mxu0 0.0
    %319 = vmatpush1.msra.mxu0 0.0
    %320 = vmatprep.subr.mxu0 0.0
    %321 = vmatpush1.msra.mxu0 0.0
    %322 = vmatprep.subr.mxu0 0.0
    %323 = vmatpush1.msra.mxu0 0.0
    %324 = vmatprep.subr.mxu0 0.0
    %325 = vmatpush1.msra.mxu0 0.0
    %326 = vmatprep.subr.mxu0 0.0
    %327 = vmatpush1.msra.mxu0 0.0
    %328 = vmatprep.subr.mxu0 0.0
    %329 = vmatpush1.msra.mxu0 0.0
    %330 = vmatprep.subr.mxu0 0.0
    %331 = vmatpush1.msra.mxu0 0.0
    %332 = vmatprep.subr.mxu0 0.0
    %333 = vmatpush1.msra.mxu0 0.0
    %334 = vmatprep.subr.mxu0 0.0
    %335 = vmatpush1.msra.mxu0 0.0
    %336 = vmatprep.subr.mxu0 0.0
    %337 = vmatpush1.msra.mxu0 0.0
    %338 = vmatprep.subr.mxu0 0.0
    %339 = vmatpush1.msra.mxu0 0.0
    %340 = vmatprep.subr.mxu0 0.0
    %341 = vmatpush1.msra.mxu0 0.0
    %342 = vmatprep.subr.mxu0 0.0
    %343 = vmatpush1.msra.mxu0 0.0
    %344 = vmatprep.subr.mxu0 0.0
    %345 = vmatpush1.msra.mxu0 0.0
    %346 = vmatprep.subr.mxu0 0.0
    %347 = vmatpush1.msra.mxu0 0.0
    %348 = vmatprep.subr.mxu0 0.0
    %349 = vmatpush1.msra.mxu0 0.0
    %350 = vmatprep.subr.mxu0 0.0
    %351 = vmatpush1.msra.mxu0 0.0
    %352 = vmatprep.subr.mxu0 0.0
    %353 = vmatpush1.msra.mxu0 0.0
    %354 = vmatprep.subr.mxu0 0.0
    %355 = vmatpush1.msra.mxu0 0.0
    %356 = vmatprep.subr.mxu0 0.0
    %357 = vmatpush1.msra.mxu0 0.0
    %358 = vmatprep.subr.mxu0 0.0
    %359 = vmatpush1.msra.mxu0 0.0
    %360 = vmatprep.subr.mxu0 0.0
    %361 = vmatpush1.msra.mxu0 0.0
    %362 = vmatprep.subr.mxu0 0.0
    %363 = vmatpush1.msra.mxu0 0.0
    %364 = vmatprep.mubr.f32.mxu0 0.0
    %365 = vmatmul.mubr.f32.gmra.mrb[0].mxu0 %v298
    %v366 = vpop.f32.mrb[0].mxu0
    %v367 = vadd.f32 0.0, %v366
    %v368 = vpop.f32.mrb[0].mxu0
    %369 = vdwg.mxu0
    %370 = vrot.lane.b32.xlu0 %v103, 64
    %v371 = vpop.permute.xlu0 %370
    %v374 = vsel %vm114, %v293, 0
    %376 = vmatprep.subr.mxu0 0.0
    %377 = vmatpush1.msra.mxu0 %v371
    %378 = vmatprep.subr.mxu0 0.0
    %379 = vmatpush1.msra.mxu0 0.0
    %380 = vmatprep.subr.mxu0 0.0
    %381 = vmatpush1.msra.mxu0 0.0
    %382 = vmatprep.subr.mxu0 0.0
    %383 = vmatpush1.msra.mxu0 0.0
    %384 = vmatprep.subr.mxu0 0.0
    %385 = vmatpush1.msra.mxu0 0.0
    %386 = vmatprep.subr.mxu0 0.0
    %387 = vmatpush1.msra.mxu0 0.0
    %388 = vmatprep.subr.mxu0 0.0
    %389 = vmatpush1.msra.mxu0 0.0
    %390 = vmatprep.subr.mxu0 0.0
    %391 = vmatpush1.msra.mxu0 0.0
    %392 = vmatprep.subr.mxu0 0.0
    %393 = vmatpush1.msra.mxu0 0.0
    %394 = vmatprep.subr.mxu0 0.0
    %395 = vmatpush1.msra.mxu0 0.0
    %396 = vmatprep.subr.mxu0 0.0
    %397 = vmatpush1.msra.mxu0 0.0
    %398 = vmatprep.subr.mxu0 0.0
    %399 = vmatpush1.msra.mxu0 0.0
    %400 = vmatprep.subr.mxu0 0.0
    %401 = vmatpush1.msra.mxu0 0.0
    %402 = vmatprep.subr.mxu0 0.0
    %403 = vmatpush1.msra.mxu0 0.0
    %404 = vmatprep.subr.mxu0 0.0
    %405 = vmatpush1.msra.mxu0 0.0
    %406 = vmatprep.subr.mxu0 0.0
    %407 = vmatpush1.msra.mxu0 0.0
    %408 = vmatprep.subr.mxu0 0.0
    %409 = vmatpush1.msra.mxu0 0.0
    %410 = vmatprep.subr.mxu0 0.0
    %411 = vmatpush1.msra.mxu0 0.0
    %412 = vmatprep.subr.mxu0 0.0
    %413 = vmatpush1.msra.mxu0 0.0
    %414 = vmatprep.subr.mxu0 0.0
    %415 = vmatpush1.msra.mxu0 0.0
    %416 = vmatprep.subr.mxu0 0.0
    %417 = vmatpush1.msra.mxu0 0.0
    %418 = vmatprep.subr.mxu0 0.0
    %419 = vmatpush1.msra.mxu0 0.0
    %420 = vmatprep.subr.mxu0 0.0
    %421 = vmatpush1.msra.mxu0 0.0
    %422 = vmatprep.subr.mxu0 0.0
    %423 = vmatpush1.msra.mxu0 0.0
    %424 = vmatprep.subr.mxu0 0.0
    %425 = vmatpush1.msra.mxu0 0.0
    %426 = vmatprep.subr.mxu0 0.0
    %427 = vmatpush1.msra.mxu0 0.0
    %428 = vmatprep.subr.mxu0 0.0
    %429 = vmatpush1.msra.mxu0 0.0
    %430 = vmatprep.subr.mxu0 0.0
    %431 = vmatpush1.msra.mxu0 0.0
    %432 = vmatprep.subr.mxu0 0.0
    %433 = vmatpush1.msra.mxu0 0.0
    %434 = vmatprep.subr.mxu0 0.0
    %435 = vmatpush1.msra.mxu0 0.0
    %436 = vmatprep.subr.mxu0 0.0
    %437 = vmatpush1.msra.mxu0 0.0
    %438 = vmatprep.subr.mxu0 0.0
    %439 = vmatpush1.msra.mxu0 0.0
    %440 = vmatprep.mubr.f32.mxu0 0.0
    %441 = vmatmul.mubr.f32.gmra.mrb[0].mxu0 %v374
    %v442 = vpop.f32.mrb[0].mxu0
    %v443 = vadd.f32 0.0, %v442
    %v444 = vpop.f32.mrb[0].mxu0
    %445 = vdwg.mxu0
    %446 = vrot.lane.b32.xlu0 %v98, 120
    %v447 = vpop.permute.xlu0 %446
    %448 = vrot.lane.b32.xlu0 %v98, 88
    %v449 = vpop.permute.xlu0 %448
    %v450 = vsel %vm114, %v447, 0
    %v452 = vsel %vm114, %v449, 0
    %454 = vmatprep.subr.mxu0 0.0
    %455 = vmatpush1.xpose.msra.mxu0 %v452
    %456 = vmatprep.subr.mxu0 0.0
    %457 = vmatpush1.xpose.msra.mxu0 0.0
    %458 = vmatprep.subr.mxu0 0.0
    %459 = vmatpush1.xpose.msra.mxu0 0.0
    %460 = vmatprep.subr.mxu0 0.0
    %461 = vmatpush1.xpose.msra.mxu0 0.0
    %462 = vmatprep.subr.mxu0 0.0
    %463 = vmatpush1.xpose.msra.mxu0 0.0
    %464 = vmatprep.subr.mxu0 0.0
    %465 = vmatpush1.xpose.msra.mxu0 0.0
    %466 = vmatprep.subr.mxu0 0.0
    %467 = vmatpush1.xpose.msra.mxu0 0.0
    %468 = vmatprep.subr.mxu0 0.0
    %469 = vmatpush1.xpose.msra.mxu0 0.0
    %470 = vmatprep.subr.mxu0 0.0
    %471 = vmatpush1.xpose.msra.mxu0 0.0
    %472 = vmatprep.subr.mxu0 0.0
    %473 = vmatpush1.xpose.msra.mxu0 0.0
    %474 = vmatprep.subr.mxu0 0.0
    %475 = vmatpush1.xpose.msra.mxu0 0.0
    %476 = vmatprep.subr.mxu0 0.0
    %477 = vmatpush1.xpose.msra.mxu0 0.0
    %478 = vmatprep.subr.mxu0 0.0
    %479 = vmatpush1.xpose.msra.mxu0 0.0
    %480 = vmatprep.subr.mxu0 0.0
    %481 = vmatpush1.xpose.msra.mxu0 0.0
    %482 = vmatprep.subr.mxu0 0.0
    %483 = vmatpush1.xpose.msra.mxu0 0.0
    %484 = vmatprep.subr.mxu0 0.0
    %485 = vmatpush1.xpose.msra.mxu0 0.0
    %486 = vmatprep.subr.mxu0 0.0
    %487 = vmatpush1.xpose.msra.mxu0 0.0
    %488 = vmatprep.subr.mxu0 0.0
    %489 = vmatpush1.xpose.msra.mxu0 0.0
    %490 = vmatprep.subr.mxu0 0.0
    %491 = vmatpush1.xpose.msra.mxu0 0.0
    %492 = vmatprep.subr.mxu0 0.0
    %493 = vmatpush1.xpose.msra.mxu0 0.0
    %494 = vmatprep.subr.mxu0 0.0
    %495 = vmatpush1.xpose.msra.mxu0 0.0
    %496 = vmatprep.subr.mxu0 0.0
    %497 = vmatpush1.xpose.msra.mxu0 0.0
    %498 = vmatprep.subr.mxu0 0.0
    %499 = vmatpush1.xpose.msra.mxu0 0.0
    %500 = vmatprep.subr.mxu0 0.0
    %501 = vmatpush1.xpose.msra.mxu0 0.0
    %502 = vmatprep.subr.mxu0 0.0
    %503 = vmatpush1.xpose.msra.mxu0 0.0
    %504 = vmatprep.subr.mxu0 0.0
    %505 = vmatpush1.xpose.msra.mxu0 0.0
    %506 = vmatprep.subr.mxu0 0.0
    %507 = vmatpush1.xpose.msra.mxu0 0.0
    %508 = vmatprep.subr.mxu0 0.0
    %509 = vmatpush1.xpose.msra.mxu0 0.0
    %510 = vmatprep.subr.mxu0 0.0
    %511 = vmatpush1.xpose.msra.mxu0 0.0
    %512 = vmatprep.subr.mxu0 0.0
    %513 = vmatpush1.xpose.msra.mxu0 0.0
    %514 = vmatprep.subr.mxu0 0.0
    %515 = vmatpush1.xpose.msra.mxu0 0.0
    %516 = vmatprep.subr.mxu0 0.0
    %517 = vmatpush1.xpose.msra.mxu0 0.0
    %518 = vmatprep.mubr.f32.mxu0 0.0
    %519 = vmatmul.mubr.f32.gmra.mrb[0].mxu0 %v450
    %v520 = vpop.f32.mrb[0].mxu0
    %v521 = vadd.f32 0.0, %v520
    %v522 = vpop.f32.mrb[0].mxu0
    %523 = vdwg.mxu0
    %524 = vrot.lane.b32.xlu0 %v103, 120
    %v525 = vpop.permute.xlu0 %524
    %526 = vrot.lane.b32.xlu0 %v103, 88
    %v527 = vpop.permute.xlu0 %526
    %v528 = vsel %vm114, %v525, 0
    %v530 = vsel %vm114, %v527, 0
    %532 = vmatprep.subr.mxu0 0.0
    %533 = vmatpush1.xpose.msra.mxu0 %v530
    %534 = vmatprep.subr.mxu0 0.0
    %535 = vmatpush1.xpose.msra.mxu0 0.0
    %536 = vmatprep.subr.mxu0 0.0
    %537 = vmatpush1.xpose.msra.mxu0 0.0
    %538 = vmatprep.subr.mxu0 0.0
    %539 = vmatpush1.xpose.msra.mxu0 0.0
    %540 = vmatprep.subr.mxu0 0.0
    %541 = vmatpush1.xpose.msra.mxu0 0.0
    %542 = vmatprep.subr.mxu0 0.0
    %543 = vmatpush1.xpose.msra.mxu0 0.0
    %544 = vmatprep.subr.mxu0 0.0
    %545 = vmatpush1.xpose.msra.mxu0 0.0
    %546 = vmatprep.subr.mxu0 0.0
    %547 = vmatpush1.xpose.msra.mxu0 0.0
    %548 = vmatprep.subr.mxu0 0.0
    %549 = vmatpush1.xpose.msra.mxu0 0.0
    %550 = vmatprep.subr.mxu0 0.0
    %551 = vmatpush1.xpose.msra.mxu0 0.0
    %552 = vmatprep.subr.mxu0 0.0
    %553 = vmatpush1.xpose.msra.mxu0 0.0
    %554 = vmatprep.subr.mxu0 0.0
    %555 = vmatpush1.xpose.msra.mxu0 0.0
    %556 = vmatprep.subr.mxu0 0.0
    %557 = vmatpush1.xpose.msra.mxu0 0.0
    %558 = vmatprep.subr.mxu0 0.0
    %559 = vmatpush1.xpose.msra.mxu0 0.0
    %560 = vmatprep.subr.mxu0 0.0
    %561 = vmatpush1.xpose.msra.mxu0 0.0
    %562 = vmatprep.subr.mxu0 0.0
    %563 = vmatpush1.xpose.msra.mxu0 0.0
    %564 = vmatprep.subr.mxu0 0.0
    %565 = vmatpush1.xpose.msra.mxu0 0.0
    %566 = vmatprep.subr.mxu0 0.0
    %567 = vmatpush1.xpose.msra.mxu0 0.0
    %568 = vmatprep.subr.mxu0 0.0
    %569 = vmatpush1.xpose.msra.mxu0 0.0
    %570 = vmatprep.subr.mxu0 0.0
    %571 = vmatpush1.xpose.msra.mxu0 0.0
    %572 = vmatprep.subr.mxu0 0.0
    %573 = vmatpush1.xpose.msra.mxu0 0.0
    %574 = vmatprep.subr.mxu0 0.0
    %575 = vmatpush1.xpose.msra.mxu0 0.0
    %576 = vmatprep.subr.mxu0 0.0
    %577 = vmatpush1.xpose.msra.mxu0 0.0
    %578 = vmatprep.subr.mxu0 0.0
    %579 = vmatpush1.xpose.msra.mxu0 0.0
    %580 = vmatprep.subr.mxu0 0.0
    %581 = vmatpush1.xpose.msra.mxu0 0.0
    %582 = vmatprep.subr.mxu0 0.0
    %583 = vmatpush1.xpose.msra.mxu0 0.0
    %584 = vmatprep.subr.mxu0 0.0
    %585 = vmatpush1.xpose.msra.mxu0 0.0
    %586 = vmatprep.subr.mxu0 0.0
    %587 = vmatpush1.xpose.msra.mxu0 0.0
    %588 = vmatprep.subr.mxu0 0.0
    %589 = vmatpush1.xpose.msra.mxu0 0.0
    %590 = vmatprep.subr.mxu0 0.0
    %591 = vmatpush1.xpose.msra.mxu0 0.0
    %592 = vmatprep.subr.mxu0 0.0
    %593 = vmatpush1.xpose.msra.mxu0 0.0
    %594 = vmatprep.subr.mxu0 0.0
    %595 = vmatpush1.xpose.msra.mxu0 0.0
    %596 = vmatprep.mubr.f32.mxu0 0.0
    %597 = vmatmul.mubr.f32.gmra.mrb[0].mxu0 %v528
    %v598 = vpop.f32.mrb[0].mxu0
    %v599 = vadd.f32 0.0, %v598
    %v600 = vpop.f32.mrb[0].mxu0
    %601 = vdwg.mxu0
    %v602 = vmul.f32 %v521, 0.35355338
    %v603 = vmul.f32 %v599, 0.35355338
    %v604 = vsel %vm269, %v602, -1e+30
    %v605 = vsel %vm269, %v603, -1e+30
    %v606 = vsel %vm114, %v604, -inf
    %607 = vmax.xlane.f32.xlu0 %v606
    %v608 = vpop.xlane.xlu0 %607
    %v609 = vsel %vm114, %v605, -inf
    %610 = vmax.xlane.f32.xlu0 %v609
    %v611 = vpop.xlane.xlu0 %610
    %v612 = vsub.f32 %v604, %v608
    %v613 = vsub.f32 %v605, %v611
    %v614 = vmul.f32 %v612, 1.442695
    %v615 = vpow.pop %v614
    %v616 = vmul.f32 %v613, 1.442695
    %v617 = vpow.pop %v616
    %v618 = vsel %vm114, %v615, 0.0
    %619 = vadd.xlane.f32.xlu0 %v618
    %v620 = vpop.xlane.xlu0 %619
    %v621 = vsel %vm114, %v617, 0.0
    %622 = vadd.xlane.f32.xlu0 %v621
    %v623 = vpop.xlane.xlu0 %622
    %v624 = vrcp.pop %v620
    %v625 = vrcp.pop %v623
    %v626 = vmul.f32 %v615, %v624
    %v627 = vmul.f32 %v617, %v625
    %628 = vrot.lane.b32.xlu0 %v98, 56
    %v629 = vpop.permute.xlu0 %628
    %v632 = vsel %vm114, %v626, 0
    %634 = vmatprep.subr.mxu0 0.0
    %635 = vmatpush1.msra.mxu0 %v629
    %636 = vmatprep.subr.mxu0 0.0
    %637 = vmatpush1.msra.mxu0 0.0
    %638 = vmatprep.subr.mxu0 0.0
    %639 = vmatpush1.msra.mxu0 0.0
    %640 = vmatprep.subr.mxu0 0.0
    %641 = vmatpush1.msra.mxu0 0.0
    %642 = vmatprep.subr.mxu0 0.0
    %643 = vmatpush1.msra.mxu0 0.0
    %644 = vmatprep.subr.mxu0 0.0
    %645 = vmatpush1.msra.mxu0 0.0
    %646 = vmatprep.subr.mxu0 0.0
    %647 = vmatpush1.msra.mxu0 0.0
    %648 = vmatprep.subr.mxu0 0.0
    %649 = vmatpush1.msra.mxu0 0.0
    %650 = vmatprep.subr.mxu0 0.0
    %651 = vmatpush1.msra.mxu0 0.0
    %652 = vmatprep.subr.mxu0 0.0
    %653 = vmatpush1.msra.mxu0 0.0
    %654 = vmatprep.subr.mxu0 0.0
    %655 = vmatpush1.msra.mxu0 0.0
    %656 = vmatprep.subr.mxu0 0.0
    %657 = vmatpush1.msra.mxu0 0.0
    %658 = vmatprep.subr.mxu0 0.0
    %659 = vmatpush1.msra.mxu0 0.0
    %660 = vmatprep.subr.mxu0 0.0
    %661 = vmatpush1.msra.mxu0 0.0
    %662 = vmatprep.subr.mxu0 0.0
    %663 = vmatpush1.msra.mxu0 0.0
    %664 = vmatprep.subr.mxu0 0.0
    %665 = vmatpush1.msra.mxu0 0.0
    %666 = vmatprep.subr.mxu0 0.0
    %667 = vmatpush1.msra.mxu0 0.0
    %668 = vmatprep.subr.mxu0 0.0
    %669 = vmatpush1.msra.mxu0 0.0
    %670 = vmatprep.subr.mxu0 0.0
    %671 = vmatpush1.msra.mxu0 0.0
    %672 = vmatprep.subr.mxu0 0.0
    %673 = vmatpush1.msra.mxu0 0.0
    %674 = vmatprep.subr.mxu0 0.0
    %675 = vmatpush1.msra.mxu0 0.0
    %676 = vmatprep.subr.mxu0 0.0
    %677 = vmatpush1.msra.mxu0 0.0
    %678 = vmatprep.subr.mxu0 0.0
    %679 = vmatpush1.msra.mxu0 0.0
    %680 = vmatprep.subr.mxu0 0.0
    %681 = vmatpush1.msra.mxu0 0.0
    %682 = vmatprep.subr.mxu0 0.0
    %683 = vmatpush1.msra.mxu0 0.0
    %684 = vmatprep.subr.mxu0 0.0
    %685 = vmatpush1.msra.mxu0 0.0
    %686 = vmatprep.subr.mxu0 0.0
    %687 = vmatpush1.msra.mxu0 0.0
    %688 = vmatprep.subr.mxu0 0.0
    %689 = vmatpush1.msra.mxu0 0.0
    %690 = vmatprep.subr.mxu0 0.0
    %691 = vmatpush1.msra.mxu0 0.0
    %692 = vmatprep.subr.mxu0 0.0
    %693 = vmatpush1.msra.mxu0 0.0
    %694 = vmatprep.subr.mxu0 0.0
    %695 = vmatpush1.msra.mxu0 0.0
    %696 = vmatprep.subr.mxu0 0.0
    %697 = vmatpush1.msra.mxu0 0.0
    %698 = vmatprep.mubr.f32.mxu0 0.0
    %699 = vmatmul.mubr.f32.gmra.mrb[0].mxu0 %v632
    %v700 = vpop.f32.mrb[0].mxu0
    %v701 = vadd.f32 0.0, %v700
    %v702 = vpop.f32.mrb[0].mxu0
    %703 = vdwg.mxu0
    %704 = vrot.lane.b32.xlu0 %v103, 56
    %v705 = vpop.permute.xlu0 %704
    %v708 = vsel %vm114, %v627, 0
    %710 = vmatprep.subr.mxu0 0.0
    %711 = vmatpush1.msra.mxu0 %v705
    %712 = vmatprep.subr.mxu0 0.0
    %713 = vmatpush1.msra.mxu0 0.0
    %714 = vmatprep.subr.mxu0 0.0
    %715 = vmatpush1.msra.mxu0 0.0
    %716 = vmatprep.subr.mxu0 0.0
    %717 = vmatpush1.msra.mxu0 0.0
    %718 = vmatprep.subr.mxu0 0.0
    %719 = vmatpush1.msra.mxu0 0.0
    %720 = vmatprep.subr.mxu0 0.0
    %721 = vmatpush1.msra.mxu0 0.0
    %722 = vmatprep.subr.mxu0 0.0
    %723 = vmatpush1.msra.mxu0 0.0
    %724 = vmatprep.subr.mxu0 0.0
    %725 = vmatpush1.msra.mxu0 0.0
    %726 = vmatprep.subr.mxu0 0.0
    %727 = vmatpush1.msra.mxu0 0.0
    %728 = vmatprep.subr.mxu0 0.0
    %729 = vmatpush1.msra.mxu0 0.0
    %730 = vmatprep.subr.mxu0 0.0
    %731 = vmatpush1.msra.mxu0 0.0
    %732 = vmatprep.subr.mxu0 0.0
    %733 = vmatpush1.msra.mxu0 0.0
    %734 = vmatprep.subr.mxu0 0.0
    %735 = vmatpush1.msra.mxu0 0.0
    %736 = vmatprep.subr.mxu0 0.0
    %737 = vmatpush1.msra.mxu0 0.0
    %738 = vmatprep.subr.mxu0 0.0
    %739 = vmatpush1.msra.mxu0 0.0
    %740 = vmatprep.subr.mxu0 0.0
    %741 = vmatpush1.msra.mxu0 0.0
    %742 = vmatprep.subr.mxu0 0.0
    %743 = vmatpush1.msra.mxu0 0.0
    %744 = vmatprep.subr.mxu0 0.0
    %745 = vmatpush1.msra.mxu0 0.0
    %746 = vmatprep.subr.mxu0 0.0
    %747 = vmatpush1.msra.mxu0 0.0
    %748 = vmatprep.subr.mxu0 0.0
    %749 = vmatpush1.msra.mxu0 0.0
    %750 = vmatprep.subr.mxu0 0.0
    %751 = vmatpush1.msra.mxu0 0.0
    %752 = vmatprep.subr.mxu0 0.0
    %753 = vmatpush1.msra.mxu0 0.0
    %754 = vmatprep.subr.mxu0 0.0
    %755 = vmatpush1.msra.mxu0 0.0
    %756 = vmatprep.subr.mxu0 0.0
    %757 = vmatpush1.msra.mxu0 0.0
    %758 = vmatprep.subr.mxu0 0.0
    %759 = vmatpush1.msra.mxu0 0.0
    %760 = vmatprep.subr.mxu0 0.0
    %761 = vmatpush1.msra.mxu0 0.0
    %762 = vmatprep.subr.mxu0 0.0
    %763 = vmatpush1.msra.mxu0 0.0
    %764 = vmatprep.subr.mxu0 0.0
    %765 = vmatpush1.msra.mxu0 0.0
    %766 = vmatprep.subr.mxu0 0.0
    %767 = vmatpush1.msra.mxu0 0.0
    %768 = vmatprep.subr.mxu0 0.0
    %769 = vmatpush1.msra.mxu0 0.0
    %770 = vmatprep.subr.mxu0 0.0
    %771 = vmatpush1.msra.mxu0 0.0
    %772 = vmatprep.subr.mxu0 0.0
    %773 = vmatpush1.msra.mxu0 0.0
    %774 = vmatprep.mubr.f32.mxu0 0.0
    %775 = vmatmul.mubr.f32.gmra.mrb[0].mxu0 %v708
    %v776 = vpop.f32.mrb[0].mxu0
    %v777 = vadd.f32 0.0, %v776
    %v778 = vpop.f32.mrb[0].mxu0
    %779 = vdwg.mxu0
    %780 = vrot.lane.b32.xlu0 %v98, 112
    %v781 = vpop.permute.xlu0 %780
    %782 = vrot.lane.b32.xlu0 %v98, 80
    %v783 = vpop.permute.xlu0 %782
    %v784 = vsel %vm114, %v781, 0
    %v786 = vsel %vm114, %v783, 0
    %788 = vmatprep.subr.mxu0 0.0
    %789 = vmatpush1.xpose.msra.mxu0 %v786
    %790 = vmatprep.subr.mxu0 0.0
    %791 = vmatpush1.xpose.msra.mxu0 0.0
    %792 = vmatprep.subr.mxu0 0.0
    %793 = vmatpush1.xpose.msra.mxu0 0.0
    %794 = vmatprep.subr.mxu0 0.0
    %795 = vmatpush1.xpose.msra.mxu0 0.0
    %796 = vmatprep.subr.mxu0 0.0
    %797 = vmatpush1.xpose.msra.mxu0 0.0
    %798 = vmatprep.subr.mxu0 0.0
    %799 = vmatpush1.xpose.msra.mxu0 0.0
    %800 = vmatprep.subr.mxu0 0.0
    %801 = vmatpush1.xpose.msra.mxu0 0.0
    %802 = vmatprep.subr.mxu0 0.0
    %803 = vmatpush1.xpose.msra.mxu0 0.0
    %804 = vmatprep.subr.mxu0 0.0
    %805 = vmatpush1.xpose.msra.mxu0 0.0
    %806 = vmatprep.subr.mxu0 0.0
    %807 = vmatpush1.xpose.msra.mxu0 0.0
    %808 = vmatprep.subr.mxu0 0.0
    %809 = vmatpush1.xpose.msra.mxu0 0.0
    %810 = vmatprep.subr.mxu0 0.0
    %811 = vmatpush1.xpose.msra.mxu0 0.0
    %812 = vmatprep.subr.mxu0 0.0
    %813 = vmatpush1.xpose.msra.mxu0 0.0
    %814 = vmatprep.subr.mxu0 0.0
    %815 = vmatpush1.xpose.msra.mxu0 0.0
    %816 = vmatprep.subr.mxu0 0.0
    %817 = vmatpush1.xpose.msra.mxu0 0.0
    %818 = vmatprep.subr.mxu0 0.0
    %819 = vmatpush1.xpose.msra.mxu0 0.0
    %820 = vmatprep.subr.mxu0 0.0
    %821 = vmatpush1.xpose.msra.mxu0 0.0
    %822 = vmatprep.subr.mxu0 0.0
    %823 = vmatpush1.xpose.msra.mxu0 0.0
    %824 = vmatprep.subr.mxu0 0.0
    %825 = vmatpush1.xpose.msra.mxu0 0.0
    %826 = vmatprep.subr.mxu0 0.0
    %827 = vmatpush1.xpose.msra.mxu0 0.0
    %828 = vmatprep.subr.mxu0 0.0
    %829 = vmatpush1.xpose.msra.mxu0 0.0
    %830 = vmatprep.subr.mxu0 0.0
    %831 = vmatpush1.xpose.msra.mxu0 0.0
    %832 = vmatprep.subr.mxu0 0.0
    %833 = vmatpush1.xpose.msra.mxu0 0.0
    %834 = vmatprep.subr.mxu0 0.0
    %835 = vmatpush1.xpose.msra.mxu0 0.0
    %836 = vmatprep.subr.mxu0 0.0
    %837 = vmatpush1.xpose.msra.mxu0 0.0
    %838 = vmatprep.subr.mxu0 0.0
    %839 = vmatpush1.xpose.msra.mxu0 0.0
    %840 = vmatprep.subr.mxu0 0.0
    %841 = vmatpush1.xpose.msra.mxu0 0.0
    %842 = vmatprep.subr.mxu0 0.0
    %843 = vmatpush1.xpose.msra.mxu0 0.0
    %844 = vmatprep.subr.mxu0 0.0
    %845 = vmatpush1.xpose.msra.mxu0 0.0
    %846 = vmatprep.subr.mxu0 0.0
    %847 = vmatpush1.xpose.msra.mxu0 0.0
    %848 = vmatprep.subr.mxu0 0.0
    %849 = vmatpush1.xpose.msra.mxu0 0.0
    %850 = vmatprep.subr.mxu0 0.0
    %851 = vmatpush1.xpose.msra.mxu0 0.0
    %852 = vmatprep.mubr.f32.mxu0 0.0
    %853 = vmatmul.mubr.f32.gmra.mrb[0].mxu0 %v784
    %v854 = vpop.f32.mrb[0].mxu0
    %v855 = vadd.f32 0.0, %v854
    %v856 = vpop.f32.mrb[0].mxu0
    %857 = vdwg.mxu0
    %858 = vrot.lane.b32.xlu0 %v103, 112
    %v859 = vpop.permute.xlu0 %858
    %860 = vrot.lane.b32.xlu0 %v103, 80
    %v861 = vpop.permute.xlu0 %860
    %v862 = vsel %vm114, %v859, 0
    %v864 = vsel %vm114, %v861, 0
    %866 = vmatprep.subr.mxu0 0.0
    %867 = vmatpush1.xpose.msra.mxu0 %v864
    %868 = vmatprep.subr.mxu0 0.0
    %869 = vmatpush1.xpose.msra.mxu0 0.0
    %870 = vmatprep.subr.mxu0 0.0
    %871 = vmatpush1.xpose.msra.mxu0 0.0
    %872 = vmatprep.subr.mxu0 0.0
    %873 = vmatpush1.xpose.msra.mxu0 0.0
    %874 = vmatprep.subr.mxu0 0.0
    %875 = vmatpush1.xpose.msra.mxu0 0.0
    %876 = vmatprep.subr.mxu0 0.0
    %877 = vmatpush1.xpose.msra.mxu0 0.0
    %878 = vmatprep.subr.mxu0 0.0
    %879 = vmatpush1.xpose.msra.mxu0 0.0
    %880 = vmatprep.subr.mxu0 0.0
    %881 = vmatpush1.xpose.msra.mxu0 0.0
    %882 = vmatprep.subr.mxu0 0.0
    %883 = vmatpush1.xpose.msra.mxu0 0.0
    %884 = vmatprep.subr.mxu0 0.0
    %885 = vmatpush1.xpose.msra.mxu0 0.0
    %886 = vmatprep.subr.mxu0 0.0
    %887 = vmatpush1.xpose.msra.mxu0 0.0
    %888 = vmatprep.subr.mxu0 0.0
    %889 = vmatpush1.xpose.msra.mxu0 0.0
    %890 = vmatprep.subr.mxu0 0.0
    %891 = vmatpush1.xpose.msra.mxu0 0.0
    %892 = vmatprep.subr.mxu0 0.0
    %893 = vmatpush1.xpose.msra.mxu0 0.0
    %894 = vmatprep.subr.mxu0 0.0
    %895 = vmatpush1.xpose.msra.mxu0 0.0
    %896 = vmatprep.subr.mxu0 0.0
    %897 = vmatpush1.xpose.msra.mxu0 0.0
    %898 = vmatprep.subr.mxu0 0.0
    %899 = vmatpush1.xpose.msra.mxu0 0.0
    %900 = vmatprep.subr.mxu0 0.0
    %901 = vmatpush1.xpose.msra.mxu0 0.0
    %902 = vmatprep.subr.mxu0 0.0
    %903 = vmatpush1.xpose.msra.mxu0 0.0
    %904 = vmatprep.subr.mxu0 0.0
    %905 = vmatpush1.xpose.msra.mxu0 0.0
    %906 = vmatprep.subr.mxu0 0.0
    %907 = vmatpush1.xpose.msra.mxu0 0.0
    %908 = vmatprep.subr.mxu0 0.0
    %909 = vmatpush1.xpose.msra.mxu0 0.0
    %910 = vmatprep.subr.mxu0 0.0
    %911 = vmatpush1.xpose.msra.mxu0 0.0
    %912 = vmatprep.subr.mxu0 0.0
    %913 = vmatpush1.xpose.msra.mxu0 0.0
    %914 = vmatprep.subr.mxu0 0.0
    %915 = vmatpush1.xpose.msra.mxu0 0.0
    %916 = vmatprep.subr.mxu0 0.0
    %917 = vmatpush1.xpose.msra.mxu0 0.0
    %918 = vmatprep.subr.mxu0 0.0
    %919 = vmatpush1.xpose.msra.mxu0 0.0
    %920 = vmatprep.subr.mxu0 0.0
    %921 = vmatpush1.xpose.msra.mxu0 0.0
    %922 = vmatprep.subr.mxu0 0.0
    %923 = vmatpush1.xpose.msra.mxu0 0.0
    %924 = vmatprep.subr.mxu0 0.0
    %925 = vmatpush1.xpose.msra.mxu0 0.0
    %926 = vmatprep.subr.mxu0 0.0
    %927 = vmatpush1.xpose.msra.mxu0 0.0
    %928 = vmatprep.subr.mxu0 0.0
    %929 = vmatpush1.xpose.msra.mxu0 0.0
    %930 = vmatprep.mubr.f32.mxu0 0.0
    %931 = vmatmul.mubr.f32.gmra.mrb[0].mxu0 %v862
    %v932 = vpop.f32.mrb[0].mxu0
    %v933 = vadd.f32 0.0, %v932
    %v934 = vpop.f32.mrb[0].mxu0
    %935 = vdwg.mxu0
    %v936 = vmul.f32 %v855, 0.35355338
    %v937 = vmul.f32 %v933, 0.35355338
    %v938 = vsel %vm269, %v936, -1e+30
    %v939 = vsel %vm269, %v937, -1e+30
    %v940 = vsel %vm114, %v938, -inf
    %941 = vmax.xlane.f32.xlu0 %v940
    %v942 = vpop.xlane.xlu0 %941
    %v943 = vsel %vm114, %v939, -inf
    %944 = vmax.xlane.f32.xlu0 %v943
    %v945 = vpop.xlane.xlu0 %944
    %v946 = vsub.f32 %v938, %v942
    %v947 = vsub.f32 %v939, %v945
    %v948 = vmul.f32 %v946, 1.442695
    %v949 = vpow.pop %v948
    %v950 = vmul.f32 %v947, 1.442695
    %v951 = vpow.pop %v950
    %v952 = vsel %vm114, %v949, 0.0
    %953 = vadd.xlane.f32.xlu0 %v952
    %v954 = vpop.xlane.xlu0 %953
    %v955 = vsel %vm114, %v951, 0.0
    %956 = vadd.xlane.f32.xlu0 %v955
    %v957 = vpop.xlane.xlu0 %956
    %v958 = vrcp.pop %v954
    %v959 = vrcp.pop %v957
    %v960 = vmul.f32 %v949, %v958
    %v961 = vmul.f32 %v951, %v959
    %962 = vrot.lane.b32.xlu0 %v98, 48
    %v963 = vpop.permute.xlu0 %962
    %v966 = vsel %vm114, %v960, 0
    %968 = vmatprep.subr.mxu0 0.0
    %969 = vmatpush1.msra.mxu0 %v963
    %970 = vmatprep.subr.mxu0 0.0
    %971 = vmatpush1.msra.mxu0 0.0
    %972 = vmatprep.subr.mxu0 0.0
    %973 = vmatpush1.msra.mxu0 0.0
    %974 = vmatprep.subr.mxu0 0.0
    %975 = vmatpush1.msra.mxu0 0.0
    %976 = vmatprep.subr.mxu0 0.0
    %977 = vmatpush1.msra.mxu0 0.0
    %978 = vmatprep.subr.mxu0 0.0
    %979 = vmatpush1.msra.mxu0 0.0
    %980 = vmatprep.subr.mxu0 0.0
    %981 = vmatpush1.msra.mxu0 0.0
    %982 = vmatprep.subr.mxu0 0.0
    %983 = vmatpush1.msra.mxu0 0.0
    %984 = vmatprep.subr.mxu0 0.0
    %985 = vmatpush1.msra.mxu0 0.0
    %986 = vmatprep.subr.mxu0 0.0
    %987 = vmatpush1.msra.mxu0 0.0
    %988 = vmatprep.subr.mxu0 0.0
    %989 = vmatpush1.msra.mxu0 0.0
    %990 = vmatprep.subr.mxu0 0.0
    %991 = vmatpush1.msra.mxu0 0.0
    %992 = vmatprep.subr.mxu0 0.0
    %993 = vmatpush1.msra.mxu0 0.0
    %994 = vmatprep.subr.mxu0 0.0
    %995 = vmatpush1.msra.mxu0 0.0
    %996 = vmatprep.subr.mxu0 0.0
    %997 = vmatpush1.msra.mxu0 0.0
    %998 = vmatprep.subr.mxu0 0.0
    %999 = vmatpush1.msra.mxu0 0.0
    %1000 = vmatprep.subr.mxu0 0.0
    %1001 = vmatpush1.msra.mxu0 0.0
    %1002 = vmatprep.subr.mxu0 0.0
    %1003 = vmatpush1.msra.mxu0 0.0
    %1004 = vmatprep.subr.mxu0 0.0
    %1005 = vmatpush1.msra.mxu0 0.0
    %1006 = vmatprep.subr.mxu0 0.0
    %1007 = vmatpush1.msra.mxu0 0.0
    %1008 = vmatprep.subr.mxu0 0.0
    %1009 = vmatpush1.msra.mxu0 0.0
    %1010 = vmatprep.subr.mxu0 0.0
    %1011 = vmatpush1.msra.mxu0 0.0
    %1012 = vmatprep.subr.mxu0 0.0
    %1013 = vmatpush1.msra.mxu0 0.0
    %1014 = vmatprep.subr.mxu0 0.0
    %1015 = vmatpush1.msra.mxu0 0.0
    %1016 = vmatprep.subr.mxu0 0.0
    %1017 = vmatpush1.msra.mxu0 0.0
    %1018 = vmatprep.subr.mxu0 0.0
    %1019 = vmatpush1.msra.mxu0 0.0
    %1020 = vmatprep.subr.mxu0 0.0
    %1021 = vmatpush1.msra.mxu0 0.0
    %1022 = vmatprep.subr.mxu0 0.0
    %1023 = vmatpush1.msra.mxu0 0.0
    %1024 = vmatprep.subr.mxu0 0.0
    %1025 = vmatpush1.msra.mxu0 0.0
    %1026 = vmatprep.subr.mxu0 0.0
    %1027 = vmatpush1.msra.mxu0 0.0
    %1028 = vmatprep.subr.mxu0 0.0
    %1029 = vmatpush1.msra.mxu0 0.0
    %1030 = vmatprep.subr.mxu0 0.0
    %1031 = vmatpush1.msra.mxu0 0.0
    %1032 = vmatprep.mubr.f32.mxu0 0.0
    %1033 = vmatmul.mubr.f32.gmra.mrb[0].mxu0 %v966
    %v1034 = vpop.f32.mrb[0].mxu0
    %v1035 = vadd.f32 0.0, %v1034
    %v1036 = vpop.f32.mrb[0].mxu0
    %1037 = vdwg.mxu0
    %1038 = vrot.lane.b32.xlu0 %v103, 48
    %v1039 = vpop.permute.xlu0 %1038
    %v1042 = vsel %vm114, %v961, 0
    %1044 = vmatprep.subr.mxu0 0.0
    %1045 = vmatpush1.msra.mxu0 %v1039
    %1046 = vmatprep.subr.mxu0 0.0
    %1047 = vmatpush1.msra.mxu0 0.0
    %1048 = vmatprep.subr.mxu0 0.0
    %1049 = vmatpush1.msra.mxu0 0.0
    %1050 = vmatprep.subr.mxu0 0.0
    %1051 = vmatpush1.msra.mxu0 0.0
    %1052 = vmatprep.subr.mxu0 0.0
    %1053 = vmatpush1.msra.mxu0 0.0
    %1054 = vmatprep.subr.mxu0 0.0
    %1055 = vmatpush1.msra.mxu0 0.0
    %1056 = vmatprep.subr.mxu0 0.0
    %1057 = vmatpush1.msra.mxu0 0.0
    %1058 = vmatprep.subr.mxu0 0.0
    %1059 = vmatpush1.msra.mxu0 0.0
    %1060 = vmatprep.subr.mxu0 0.0
    %1061 = vmatpush1.msra.mxu0 0.0
    %1062 = vmatprep.subr.mxu0 0.0
    %1063 = vmatpush1.msra.mxu0 0.0
    %1064 = vmatprep.subr.mxu0 0.0
    %1065 = vmatpush1.msra.mxu0 0.0
    %1066 = vmatprep.subr.mxu0 0.0
    %1067 = vmatpush1.msra.mxu0 0.0
    %1068 = vmatprep.subr.mxu0 0.0
    %1069 = vmatpush1.msra.mxu0 0.0
    %1070 = vmatprep.subr.mxu0 0.0
    %1071 = vmatpush1.msra.mxu0 0.0
    %1072 = vmatprep.subr.mxu0 0.0
    %1073 = vmatpush1.msra.mxu0 0.0
    %1074 = vmatprep.subr.mxu0 0.0
    %1075 = vmatpush1.msra.mxu0 0.0
    %1076 = vmatprep.subr.mxu0 0.0
    %1077 = vmatpush1.msra.mxu0 0.0
    %1078 = vmatprep.subr.mxu0 0.0
    %1079 = vmatpush1.msra.mxu0 0.0
    %1080 = vmatprep.subr.mxu0 0.0
    %1081 = vmatpush1.msra.mxu0 0.0
    %1082 = vmatprep.subr.mxu0 0.0
    %1083 = vmatpush1.msra.mxu0 0.0
    %1084 = vmatprep.subr.mxu0 0.0
    %1085 = vmatpush1.msra.mxu0 0.0
    %1086 = vmatprep.subr.mxu0 0.0
    %1087 = vmatpush1.msra.mxu0 0.0
    %1088 = vmatprep.subr.mxu0 0.0
    %1089 = vmatpush1.msra.mxu0 0.0
    %1090 = vmatprep.subr.mxu0 0.0
    %1091 = vmatpush1.msra.mxu0 0.0
    %1092 = vmatprep.subr.mxu0 0.0
    %1093 = vmatpush1.msra.mxu0 0.0
    %1094 = vmatprep.subr.mxu0 0.0
    %1095 = vmatpush1.msra.mxu0 0.0
    %1096 = vmatprep.subr.mxu0 0.0
    %1097 = vmatpush1.msra.mxu0 0.0
    %1098 = vmatprep.subr.mxu0 0.0
    %1099 = vmatpush1.msra.mxu0 0.0
    %1100 = vmatprep.subr.mxu0 0.0
    %1101 = vmatpush1.msra.mxu0 0.0
    %1102 = vmatprep.subr.mxu0 0.0
    %1103 = vmatpush1.msra.mxu0 0.0
    %1104 = vmatprep.subr.mxu0 0.0
    %1105 = vmatpush1.msra.mxu0 0.0
    %1106 = vmatprep.subr.mxu0 0.0
    %1107 = vmatpush1.msra.mxu0 0.0
    %1108 = vmatprep.mubr.f32.mxu0 0.0
    %1109 = vmatmul.mubr.f32.gmra.mrb[0].mxu0 %v1042
    %v1110 = vpop.f32.mrb[0].mxu0
    %v1111 = vadd.f32 0.0, %v1110
    %v1112 = vpop.f32.mrb[0].mxu0
    %1113 = vdwg.mxu0
    %1114 = vrot.lane.b32.xlu0 %v98, 104
    %v1115 = vpop.permute.xlu0 %1114
    %1116 = vrot.lane.b32.xlu0 %v98, 72
    %v1117 = vpop.permute.xlu0 %1116
    %v1118 = vsel %vm114, %v1115, 0
    %v1120 = vsel %vm114, %v1117, 0
    %1122 = vmatprep.subr.mxu0 0.0
    %1123 = vmatpush1.xpose.msra.mxu0 %v1120
    %1124 = vmatprep.subr.mxu0 0.0
    %1125 = vmatpush1.xpose.msra.mxu0 0.0
    %1126 = vmatprep.subr.mxu0 0.0
    %1127 = vmatpush1.xpose.msra.mxu0 0.0
    %1128 = vmatprep.subr.mxu0 0.0
    %1129 = vmatpush1.xpose.msra.mxu0 0.0
    %1130 = vmatprep.subr.mxu0 0.0
    %1131 = vmatpush1.xpose.msra.mxu0 0.0
    %1132 = vmatprep.subr.mxu0 0.0
    %1133 = vmatpush1.xpose.msra.mxu0 0.0
    %1134 = vmatprep.subr.mxu0 0.0
    %1135 = vmatpush1.xpose.msra.mxu0 0.0
    %1136 = vmatprep.subr.mxu0 0.0
    %1137 = vmatpush1.xpose.msra.mxu0 0.0
    %1138 = vmatprep.subr.mxu0 0.0
    %1139 = vmatpush1.xpose.msra.mxu0 0.0
    %1140 = vmatprep.subr.mxu0 0.0
    %1141 = vmatpush1.xpose.msra.mxu0 0.0
    %1142 = vmatprep.subr.mxu0 0.0
    %1143 = vmatpush1.xpose.msra.mxu0 0.0
    %1144 = vmatprep.subr.mxu0 0.0
    %1145 = vmatpush1.xpose.msra.mxu0 0.0
    %1146 = vmatprep.subr.mxu0 0.0
    %1147 = vmatpush1.xpose.msra.mxu0 0.0
    %1148 = vmatprep.subr.mxu0 0.0
    %1149 = vmatpush1.xpose.msra.mxu0 0.0
    %1150 = vmatprep.subr.mxu0 0.0
    %1151 = vmatpush1.xpose.msra.mxu0 0.0
    %1152 = vmatprep.subr.mxu0 0.0
    %1153 = vmatpush1.xpose.msra.mxu0 0.0
    %1154 = vmatprep.subr.mxu0 0.0
    %1155 = vmatpush1.xpose.msra.mxu0 0.0
    %1156 = vmatprep.subr.mxu0 0.0
    %1157 = vmatpush1.xpose.msra.mxu0 0.0
    %1158 = vmatprep.subr.mxu0 0.0
    %1159 = vmatpush1.xpose.msra.mxu0 0.0
    %1160 = vmatprep.subr.mxu0 0.0
    %1161 = vmatpush1.xpose.msra.mxu0 0.0
    %1162 = vmatprep.subr.mxu0 0.0
    %1163 = vmatpush1.xpose.msra.mxu0 0.0
    %1164 = vmatprep.subr.mxu0 0.0
    %1165 = vmatpush1.xpose.msra.mxu0 0.0
    %1166 = vmatprep.subr.mxu0 0.0
    %1167 = vmatpush1.xpose.msra.mxu0 0.0
    %1168 = vmatprep.subr.mxu0 0.0
    %1169 = vmatpush1.xpose.msra.mxu0 0.0
    %1170 = vmatprep.subr.mxu0 0.0
    %1171 = vmatpush1.xpose.msra.mxu0 0.0
    %1172 = vmatprep.subr.mxu0 0.0
    %1173 = vmatpush1.xpose.msra.mxu0 0.0
    %1174 = vmatprep.subr.mxu0 0.0
    %1175 = vmatpush1.xpose.msra.mxu0 0.0
    %1176 = vmatprep.subr.mxu0 0.0
    %1177 = vmatpush1.xpose.msra.mxu0 0.0
    %1178 = vmatprep.subr.mxu0 0.0
    %1179 = vmatpush1.xpose.msra.mxu0 0.0
    %1180 = vmatprep.subr.mxu0 0.0
    %1181 = vmatpush1.xpose.msra.mxu0 0.0
    %1182 = vmatprep.subr.mxu0 0.0
    %1183 = vmatpush1.xpose.msra.mxu0 0.0
    %1184 = vmatprep.subr.mxu0 0.0
    %1185 = vmatpush1.xpose.msra.mxu0 0.0
    %1186 = vmatprep.mubr.f32.mxu0 0.0
    %1187 = vmatmul.mubr.f32.gmra.mrb[0].mxu0 %v1118
    %v1188 = vpop.f32.mrb[0].mxu0
    %v1189 = vadd.f32 0.0, %v1188
    %v1190 = vpop.f32.mrb[0].mxu0
    %1191 = vdwg.mxu0
    %1192 = vrot.lane.b32.xlu0 %v103, 104
    %v1193 = vpop.permute.xlu0 %1192
    %1194 = vrot.lane.b32.xlu0 %v103, 72
    %v1195 = vpop.permute.xlu0 %1194
    %v1196 = vsel %vm114, %v1193, 0
    %v1198 = vsel %vm114, %v1195, 0
    %1200 = vmatprep.subr.mxu0 0.0
    %1201 = vmatpush1.xpose.msra.mxu0 %v1198
    %1202 = vmatprep.subr.mxu0 0.0
    %1203 = vmatpush1.xpose.msra.mxu0 0.0
    %1204 = vmatprep.subr.mxu0 0.0
    %1205 = vmatpush1.xpose.msra.mxu0 0.0
    %1206 = vmatprep.subr.mxu0 0.0
    %1207 = vmatpush1.xpose.msra.mxu0 0.0
    %1208 = vmatprep.subr.mxu0 0.0
    %1209 = vmatpush1.xpose.msra.mxu0 0.0
    %1210 = vmatprep.subr.mxu0 0.0
    %1211 = vmatpush1.xpose.msra.mxu0 0.0
    %1212 = vmatprep.subr.mxu0 0.0
    %1213 = vmatpush1.xpose.msra.mxu0 0.0
    %1214 = vmatprep.subr.mxu0 0.0
    %1215 = vmatpush1.xpose.msra.mxu0 0.0
    %1216 = vmatprep.subr.mxu0 0.0
    %1217 = vmatpush1.xpose.msra.mxu0 0.0
    %1218 = vmatprep.subr.mxu0 0.0
    %1219 = vmatpush1.xpose.msra.mxu0 0.0
    %1220 = vmatprep.subr.mxu0 0.0
    %1221 = vmatpush1.xpose.msra.mxu0 0.0
    %1222 = vmatprep.subr.mxu0 0.0
    %1223 = vmatpush1.xpose.msra.mxu0 0.0
    %1224 = vmatprep.subr.mxu0 0.0
    %1225 = vmatpush1.xpose.msra.mxu0 0.0
    %1226 = vmatprep.subr.mxu0 0.0
    %1227 = vmatpush1.xpose.msra.mxu0 0.0
    %1228 = vmatprep.subr.mxu0 0.0
    %1229 = vmatpush1.xpose.msra.mxu0 0.0
    %1230 = vmatprep.subr.mxu0 0.0
    %1231 = vmatpush1.xpose.msra.mxu0 0.0
    %1232 = vmatprep.subr.mxu0 0.0
    %1233 = vmatpush1.xpose.msra.mxu0 0.0
    %1234 = vmatprep.subr.mxu0 0.0
    %1235 = vmatpush1.xpose.msra.mxu0 0.0
    %1236 = vmatprep.subr.mxu0 0.0
    %1237 = vmatpush1.xpose.msra.mxu0 0.0
    %1238 = vmatprep.subr.mxu0 0.0
    %1239 = vmatpush1.xpose.msra.mxu0 0.0
    %1240 = vmatprep.subr.mxu0 0.0
    %1241 = vmatpush1.xpose.msra.mxu0 0.0
    %1242 = vmatprep.subr.mxu0 0.0
    %1243 = vmatpush1.xpose.msra.mxu0 0.0
    %1244 = vmatprep.subr.mxu0 0.0
    %1245 = vmatpush1.xpose.msra.mxu0 0.0
    %1246 = vmatprep.subr.mxu0 0.0
    %1247 = vmatpush1.xpose.msra.mxu0 0.0
    %1248 = vmatprep.subr.mxu0 0.0
    %1249 = vmatpush1.xpose.msra.mxu0 0.0
    %1250 = vmatprep.subr.mxu0 0.0
    %1251 = vmatpush1.xpose.msra.mxu0 0.0
    %1252 = vmatprep.subr.mxu0 0.0
    %1253 = vmatpush1.xpose.msra.mxu0 0.0
    %1254 = vmatprep.subr.mxu0 0.0
    %1255 = vmatpush1.xpose.msra.mxu0 0.0
    %1256 = vmatprep.subr.mxu0 0.0
    %1257 = vmatpush1.xpose.msra.mxu0 0.0
    %1258 = vmatprep.subr.mxu0 0.0
    %1259 = vmatpush1.xpose.msra.mxu0 0.0
    %1260 = vmatprep.subr.mxu0 0.0
    %1261 = vmatpush1.xpose.msra.mxu0 0.0
    %1262 = vmatprep.subr.mxu0 0.0
    %1263 = vmatpush1.xpose.msra.mxu0 0.0
    %1264 = vmatprep.mubr.f32.mxu0 0.0
    %1265 = vmatmul.mubr.f32.gmra.mrb[0].mxu0 %v1196
    %v1266 = vpop.f32.mrb[0].mxu0
    %v1267 = vadd.f32 0.0, %v1266
    %v1268 = vpop.f32.mrb[0].mxu0
    %1269 = vdwg.mxu0
    %v1270 = vmul.f32 %v1189, 0.35355338
    %v1271 = vmul.f32 %v1267, 0.35355338
    %v1272 = vsel %vm269, %v1270, -1e+30
    %v1273 = vsel %vm269, %v1271, -1e+30
    %v1274 = vsel %vm114, %v1272, -inf
    %1275 = vmax.xlane.f32.xlu0 %v1274
    %v1276 = vpop.xlane.xlu0 %1275
    %v1277 = vsel %vm114, %v1273, -inf
    %1278 = vmax.xlane.f32.xlu0 %v1277
    %v1279 = vpop.xlane.xlu0 %1278
    %v1280 = vsub.f32 %v1272, %v1276
    %v1281 = vsub.f32 %v1273, %v1279
    %v1282 = vmul.f32 %v1280, 1.442695
    %v1283 = vpow.pop %v1282
    %v1284 = vmul.f32 %v1281, 1.442695
    %v1285 = vpow.pop %v1284
    %v1286 = vsel %vm114, %v1283, 0.0
    %1287 = vadd.xlane.f32.xlu0 %v1286
    %v1288 = vpop.xlane.xlu0 %1287
    %v1289 = vsel %vm114, %v1285, 0.0
    %1290 = vadd.xlane.f32.xlu0 %v1289
    %v1291 = vpop.xlane.xlu0 %1290
    %v1292 = vrcp.pop %v1288
    %v1293 = vrcp.pop %v1291
    %v1294 = vmul.f32 %v1283, %v1292
    %v1295 = vmul.f32 %v1285, %v1293
    %1296 = vrot.lane.b32.xlu0 %v98, 40
    %v1297 = vpop.permute.xlu0 %1296
    %v1300 = vsel %vm114, %v1294, 0
    %1302 = vmatprep.subr.mxu0 0.0
    %1303 = vmatpush1.msra.mxu0 %v1297
    %1304 = vmatprep.subr.mxu0 0.0
    %1305 = vmatpush1.msra.mxu0 0.0
    %1306 = vmatprep.subr.mxu0 0.0
    %1307 = vmatpush1.msra.mxu0 0.0
    %1308 = vmatprep.subr.mxu0 0.0
    %1309 = vmatpush1.msra.mxu0 0.0
    %1310 = vmatprep.subr.mxu0 0.0
    %1311 = vmatpush1.msra.mxu0 0.0
    %1312 = vmatprep.subr.mxu0 0.0
    %1313 = vmatpush1.msra.mxu0 0.0
    %1314 = vmatprep.subr.mxu0 0.0
    %1315 = vmatpush1.msra.mxu0 0.0
    %1316 = vmatprep.subr.mxu0 0.0
    %1317 = vmatpush1.msra.mxu0 0.0
    %1318 = vmatprep.subr.mxu0 0.0
    %1319 = vmatpush1.msra.mxu0 0.0
    %1320 = vmatprep.subr.mxu0 0.0
    %1321 = vmatpush1.msra.mxu0 0.0
    %1322 = vmatprep.subr.mxu0 0.0
    %1323 = vmatpush1.msra.mxu0 0.0
    %1324 = vmatprep.subr.mxu0 0.0
    %1325 = vmatpush1.msra.mxu0 0.0
    %1326 = vmatprep.subr.mxu0 0.0
    %1327 = vmatpush1.msra.mxu0 0.0
    %1328 = vmatprep.subr.mxu0 0.0
    %1329 = vmatpush1.msra.mxu0 0.0
    %1330 = vmatprep.subr.mxu0 0.0
    %1331 = vmatpush1.msra.mxu0 0.0
    %1332 = vmatprep.subr.mxu0 0.0
    %1333 = vmatpush1.msra.mxu0 0.0
    %1334 = vmatprep.subr.mxu0 0.0
    %1335 = vmatpush1.msra.mxu0 0.0
    %1336 = vmatprep.subr.mxu0 0.0
    %1337 = vmatpush1.msra.mxu0 0.0
    %1338 = vmatprep.subr.mxu0 0.0
    %1339 = vmatpush1.msra.mxu0 0.0
    %1340 = vmatprep.subr.mxu0 0.0
    %1341 = vmatpush1.msra.mxu0 0.0
    %1342 = vmatprep.subr.mxu0 0.0
    %1343 = vmatpush1.msra.mxu0 0.0
    %1344 = vmatprep.subr.mxu0 0.0
    %1345 = vmatpush1.msra.mxu0 0.0
    %1346 = vmatprep.subr.mxu0 0.0
    %1347 = vmatpush1.msra.mxu0 0.0
    %1348 = vmatprep.subr.mxu0 0.0
    %1349 = vmatpush1.msra.mxu0 0.0
    %1350 = vmatprep.subr.mxu0 0.0
    %1351 = vmatpush1.msra.mxu0 0.0
    %1352 = vmatprep.subr.mxu0 0.0
    %1353 = vmatpush1.msra.mxu0 0.0
    %1354 = vmatprep.subr.mxu0 0.0
    %1355 = vmatpush1.msra.mxu0 0.0
    %1356 = vmatprep.subr.mxu0 0.0
    %1357 = vmatpush1.msra.mxu0 0.0
    %1358 = vmatprep.subr.mxu0 0.0
    %1359 = vmatpush1.msra.mxu0 0.0
    %1360 = vmatprep.subr.mxu0 0.0
    %1361 = vmatpush1.msra.mxu0 0.0
    %1362 = vmatprep.subr.mxu0 0.0
    %1363 = vmatpush1.msra.mxu0 0.0
    %1364 = vmatprep.subr.mxu0 0.0
    %1365 = vmatpush1.msra.mxu0 0.0
    %1366 = vmatprep.mubr.f32.mxu0 0.0
    %1367 = vmatmul.mubr.f32.gmra.mrb[0].mxu0 %v1300
    %v1368 = vpop.f32.mrb[0].mxu0
    %v1369 = vadd.f32 0.0, %v1368
    %v1370 = vpop.f32.mrb[0].mxu0
    %1371 = vdwg.mxu0
    %1372 = vrot.lane.b32.xlu0 %v103, 40
    %v1373 = vpop.permute.xlu0 %1372
    %v1376 = vsel %vm114, %v1295, 0
    %1378 = vmatprep.subr.mxu0 0.0
    %1379 = vmatpush1.msra.mxu0 %v1373
    %1380 = vmatprep.subr.mxu0 0.0
    %1381 = vmatpush1.msra.mxu0 0.0
    %1382 = vmatprep.subr.mxu0 0.0
    %1383 = vmatpush1.msra.mxu0 0.0
    %1384 = vmatprep.subr.mxu0 0.0
    %1385 = vmatpush1.msra.mxu0 0.0
    %1386 = vmatprep.subr.mxu0 0.0
    %1387 = vmatpush1.msra.mxu0 0.0
    %1388 = vmatprep.subr.mxu0 0.0
    %1389 = vmatpush1.msra.mxu0 0.0
    %1390 = vmatprep.subr.mxu0 0.0
    %1391 = vmatpush1.msra.mxu0 0.0
    %1392 = vmatprep.subr.mxu0 0.0
    %1393 = vmatpush1.msra.mxu0 0.0
    %1394 = vmatprep.subr.mxu0 0.0
    %1395 = vmatpush1.msra.mxu0 0.0
    %1396 = vmatprep.subr.mxu0 0.0
    %1397 = vmatpush1.msra.mxu0 0.0
    %1398 = vmatprep.subr.mxu0 0.0
    %1399 = vmatpush1.msra.mxu0 0.0
    %1400 = vmatprep.subr.mxu0 0.0
    %1401 = vmatpush1.msra.mxu0 0.0
    %1402 = vmatprep.subr.mxu0 0.0
    %1403 = vmatpush1.msra.mxu0 0.0
    %1404 = vmatprep.subr.mxu0 0.0
    %1405 = vmatpush1.msra.mxu0 0.0
    %1406 = vmatprep.subr.mxu0 0.0
    %1407 = vmatpush1.msra.mxu0 0.0
    %1408 = vmatprep.subr.mxu0 0.0
    %1409 = vmatpush1.msra.mxu0 0.0
    %1410 = vmatprep.subr.mxu0 0.0
    %1411 = vmatpush1.msra.mxu0 0.0
    %1412 = vmatprep.subr.mxu0 0.0
    %1413 = vmatpush1.msra.mxu0 0.0
    %1414 = vmatprep.subr.mxu0 0.0
    %1415 = vmatpush1.msra.mxu0 0.0
    %1416 = vmatprep.subr.mxu0 0.0
    %1417 = vmatpush1.msra.mxu0 0.0
    %1418 = vmatprep.subr.mxu0 0.0
    %1419 = vmatpush1.msra.mxu0 0.0
    %1420 = vmatprep.subr.mxu0 0.0
    %1421 = vmatpush1.msra.mxu0 0.0
    %1422 = vmatprep.subr.mxu0 0.0
    %1423 = vmatpush1.msra.mxu0 0.0
    %1424 = vmatprep.subr.mxu0 0.0
    %1425 = vmatpush1.msra.mxu0 0.0
    %1426 = vmatprep.subr.mxu0 0.0
    %1427 = vmatpush1.msra.mxu0 0.0
    %1428 = vmatprep.subr.mxu0 0.0
    %1429 = vmatpush1.msra.mxu0 0.0
    %1430 = vmatprep.subr.mxu0 0.0
    %1431 = vmatpush1.msra.mxu0 0.0
    %1432 = vmatprep.subr.mxu0 0.0
    %1433 = vmatpush1.msra.mxu0 0.0
    %1434 = vmatprep.subr.mxu0 0.0
    %1435 = vmatpush1.msra.mxu0 0.0
    %1436 = vmatprep.subr.mxu0 0.0
    %1437 = vmatpush1.msra.mxu0 0.0
    %1438 = vmatprep.subr.mxu0 0.0
    %1439 = vmatpush1.msra.mxu0 0.0
    %1440 = vmatprep.subr.mxu0 0.0
    %1441 = vmatpush1.msra.mxu0 0.0
    %1442 = vmatprep.mubr.f32.mxu0 0.0
    %1443 = vmatmul.mubr.f32.gmra.mrb[0].mxu0 %v1376
    %v1444 = vpop.f32.mrb[0].mxu0
    %v1445 = vadd.f32 0.0, %v1444
    %v1446 = vpop.f32.mrb[0].mxu0
    %1447 = vdwg.mxu0
    %1450 = vrot.lane.b32.xlu0 %v701, 8
    %v1451 = vpop.permute.xlu0 %1450
    %1452 = vrot.lane.b32.xlu0 %v777, 8
    %v1453 = vpop.permute.xlu0 %1452
    %1458 = vrot.lane.b32.xlu0 %v1035, 16
    %v1459 = vpop.permute.xlu0 %1458
    %1460 = vrot.lane.b32.xlu0 %v1111, 16
    %v1461 = vpop.permute.xlu0 %1460
    %1466 = vrot.lane.b32.xlu0 %v1369, 24
    %v1467 = vpop.permute.xlu0 %1466
    %1468 = vrot.lane.b32.xlu0 %v1445, 24
    %v1469 = vpop.permute.xlu0 %1468
    %v1472 = vsel %vm114, %v367, %v1451
    %v1473 = vsel %vm114, %v443, %v1453
    %vm1474 = vcmask 130048
    %v1475 = vsel %vm1474, %v1472, %v1459
    %v1476 = vsel %vm1474, %v1473, %v1461
    %vm1477 = vcmask 195584
    %v1478 = vsel %vm1477, %v1475, %v1467
    %v1479 = vsel %vm1477, %v1476, %v1469
    %v1480 = vld [vmem:[%s2] sm:$0xff]
    %v1481 = vld [vmem:[%s2 + $0x8] sm:$0xff]
    %v1482 = vld [vmem:[%s2 + $0x10] sm:$0xff]
    %v1483 = vld [vmem:[%s2 + $0x18] sm:$0xff]
    %v1484 = vld [vmem:[%s3] sm:$0x1]
    %v1486 = vlaneseq
    %v1487 = vshrl.u32 %v1486, 7
    %v1488 = vsub.s32 0, %v1487
    %v1489 = vrot.slane %v1484, %v1488
    %v1492 = vsel %vm24, %v1478, 0
    %v1495 = vsel %vm24, %v1479, 0
    %1497 = vmatprep.subr.mxu0 0.0
    %1498 = vmatpush1.msra.mxu0 %v1480
    %1499 = vmatprep.subr.mxu0 0.0
    %1500 = vmatpush1.msra.mxu0 %v1481
    %1501 = vmatprep.subr.mxu0 0.0
    %1502 = vmatpush1.msra.mxu0 %v1482
    %1503 = vmatprep.subr.mxu0 0.0
    %1504 = vmatpush1.msra.mxu0 %v1483
    %1505 = vmatprep.subr.mxu0 0.0
    %1506 = vmatpush1.msra.mxu0 0.0
    %1507 = vmatprep.subr.mxu0 0.0
    %1508 = vmatpush1.msra.mxu0 0.0
    %1509 = vmatprep.subr.mxu0 0.0
    %1510 = vmatpush1.msra.mxu0 0.0
    %1511 = vmatprep.subr.mxu0 0.0
    %1512 = vmatpush1.msra.mxu0 0.0
    %1513 = vmatprep.subr.mxu0 0.0
    %1514 = vmatpush1.msra.mxu0 0.0
    %1515 = vmatprep.subr.mxu0 0.0
    %1516 = vmatpush1.msra.mxu0 0.0
    %1517 = vmatprep.subr.mxu0 0.0
    %1518 = vmatpush1.msra.mxu0 0.0
    %1519 = vmatprep.subr.mxu0 0.0
    %1520 = vmatpush1.msra.mxu0 0.0
    %1521 = vmatprep.subr.mxu0 0.0
    %1522 = vmatpush1.msra.mxu0 0.0
    %1523 = vmatprep.subr.mxu0 0.0
    %1524 = vmatpush1.msra.mxu0 0.0
    %1525 = vmatprep.subr.mxu0 0.0
    %1526 = vmatpush1.msra.mxu0 0.0
    %1527 = vmatprep.subr.mxu0 0.0
    %1528 = vmatpush1.msra.mxu0 0.0
    %1529 = vmatprep.subr.mxu0 0.0
    %1530 = vmatpush1.msra.mxu0 0.0
    %1531 = vmatprep.subr.mxu0 0.0
    %1532 = vmatpush1.msra.mxu0 0.0
    %1533 = vmatprep.subr.mxu0 0.0
    %1534 = vmatpush1.msra.mxu0 0.0
    %1535 = vmatprep.subr.mxu0 0.0
    %1536 = vmatpush1.msra.mxu0 0.0
    %1537 = vmatprep.subr.mxu0 0.0
    %1538 = vmatpush1.msra.mxu0 0.0
    %1539 = vmatprep.subr.mxu0 0.0
    %1540 = vmatpush1.msra.mxu0 0.0
    %1541 = vmatprep.subr.mxu0 0.0
    %1542 = vmatpush1.msra.mxu0 0.0
    %1543 = vmatprep.subr.mxu0 0.0
    %1544 = vmatpush1.msra.mxu0 0.0
    %1545 = vmatprep.subr.mxu0 0.0
    %1546 = vmatpush1.msra.mxu0 0.0
    %1547 = vmatprep.subr.mxu0 0.0
    %1548 = vmatpush1.msra.mxu0 0.0
    %1549 = vmatprep.subr.mxu0 0.0
    %1550 = vmatpush1.msra.mxu0 0.0
    %1551 = vmatprep.subr.mxu0 0.0
    %1552 = vmatpush1.msra.mxu0 0.0
    %1553 = vmatprep.subr.mxu0 0.0
    %1554 = vmatpush1.msra.mxu0 0.0
    %1555 = vmatprep.subr.mxu0 0.0
    %1556 = vmatpush1.msra.mxu0 0.0
    %1557 = vmatprep.subr.mxu0 0.0
    %1558 = vmatpush1.msra.mxu0 0.0
    %1559 = vmatprep.subr.mxu0 0.0
    %1560 = vmatpush1.msra.mxu0 0.0
    %1561 = vmatprep.mubr.f32.mxu0 0.0
    %1562 = vmatmul.mubr.f32.gmra.mrb[0].mxu0 %v1492
    %v1563 = vpop.f32.mrb[0].mxu0
    %v1564 = vadd.f32 %v1489, %v1563
    %v1565 = vpop.f32.mrb[0].mxu0
    %1566 = vmatprep.mubr.f32.mxu0 0.0
    %1567 = vmatmul.mubr.f32.gmra.mrb[0].mxu0 %v1495
    %v1568 = vpop.f32.mrb[0].mxu0
    %v1569 = vadd.f32 %v1489, %v1568
    %v1570 = vpop.f32.mrb[0].mxu0
    %1571 = vdwg.mxu0
    %1572 = vst.msk [vmem:[#allocation2] sm:$0xff] %vm24, %v1564
    %1573 = vst.msk [vmem:[#allocation2 + $0x8] sm:$0xff] %vm24, %v1569
    // Predicated region
    $region18: #{multi_head_attention.1} parent=1 // pred_check
      _
    $region19: #{multi_head_attention.1} parent=1 // pred_check_branch
      %1575 = sbr.rel (0) target = $region21
    $region20: #{multi_head_attention.1} parent=1 // pred_region
      %s1577 = ssub.s32 256, 256
      %1578 = vsyncadd [#allocation3], %s1577
      %s1579 = sshll.u32 [#allocation2], 4
      %s1580 = int_to_ptr.vmem [resolvable:$true] %s1579
      %1585 = dma.vmem_to_hbm [thread:$0]  %s1580, 256, %s4, [#allocation3], 128, 128, 8
    $region21: #{multi_head_attention.1} parent=1 // pred_fallthru
      _
    // Predicated region
    $region22: #{multi_head_attention.1} parent=1 // pred_check
      _
    $region23: #{multi_head_attention.1} parent=1 // pred_check_branch
      %1587 = sbr.rel (0) target = $region25
    $region24: #{multi_head_attention.1} parent=1 // pred_region
      %1588 = dma.done [#allocation3], 256
    $region25: #{multi_head_attention.1} parent=1 // pred_fallthru
      _
    %1589 = vsyncpa [#allocation3], 1

</llo_original>
